<compile_context>
chip_gen: v6e
topology: v6e:2x2x1
jax: 0.10.0
libtpu: 0.0.40
codegen_flags: <defaults>
</compile_context>

<pallas_src>
import jax
import jax.numpy as jnp
from jax import lax
from jax.experimental import pallas as pl
from jax.experimental.pallas import tpu as pltpu

N, H, W, C = 2, 16, 16, 8          # batch, height, width, n_channel
DILATIONS = (1, 2, 4, 8, 16)       # W-dilation of the 5 depthwise convs
BN_EPS = 1e-5
R = N * H                          # packed rows:  r = n*H + h   (= 32)
L = W * C                          # packed lanes: l = w*C + c   (= 128)
K3 = 3 * L                         # folded contraction dim: kh = 0,1,2 slabs


def resblock_kernel(prelu_ref, x_ref, wfold_ref, fb_ref, gamma_ref, beta_ref,
                    out_ref):
    """Whole ResBlock forward, grid-less, everything resident in VMEM/vregs."""
    inv_cnt = 1.0 / float(N * H * W)
    alpha = prelu_ref[0, 0]                       # shared PReLU scalar (SMEM)

    # Only the two row-boundary masks stay live across layers.
    h_idx = lax.broadcasted_iota(jnp.int32, (R, L), 0) % H
    row_ok_up = h_idx > 0                         # h-1 exists (same image)
    row_ok_dn = h_idx < H - 1                     # h+1 exists (same image)

    def layer(t, i):
        # ---- kh taps: +/-1 sublane rolls (XLU) + image-boundary masks ----
        up = jnp.where(row_ok_up, pltpu.roll(t, 1, axis=0), 0.0)      # x[h-1]
        dn = jnp.where(row_ok_dn, pltpu.roll(t, R - 1, axis=0), 0.0)  # x[h+1]
        lhs = jnp.concatenate([up, t, dn], axis=1)                    # (32,384)

        # ---- depthwise (kw dilation bands, per-channel taps) + pointwise 1x1
        #      folded into ONE banded (384,128) weight -> single MXU dot ----
        y = jnp.dot(lhs, wfold_ref[i], preferred_element_type=jnp.float32)
        y = y + fb_ref[i:i + 1, :]    # depthwise bias folded through 1x1 + pw bias

        # ---- PReLU (single parameter shared by all 5 layers) ----
        y = jnp.where(y >= 0.0, y, y * alpha)

        # ---- BatchNorm2d, training-mode batch stats, single pass ----
        s1 = jnp.sum(y, axis=0, keepdims=True)          # (1,128)
        s2 = jnp.sum(y * y, axis=0, keepdims=True)      # (1,128)
        st = jnp.concatenate([s1, s2], axis=0)          # (2,128): one roll tree
        for sh in (C, 2 * C, 4 * C, 8 * C):             # sum W copies / channel
            st = st + pltpu.roll(st, sh, axis=1)
        mean = st[0:1, :] * inv_cnt
        var = st[1:2, :] * inv_cnt - mean * mean        # biased variance
        scale = gamma_ref[i:i + 1, :] * lax.rsqrt(var + BN_EPS)
        shift = beta_ref[i:i + 1, :] - mean * scale
        return y * scale + shift

    res = layer(x_ref[...], 0)
    for i in range(1, 5):
        res = res + layer(res, i)
    out_ref[...] = res
    # TODO(synk): BatchNorm running_mean/running_var buffer updates (a
    # training-mode side effect on the module) are not materialized; they do
    # not affect the returned tensor.


# --------------------- one-time parameter packing (cold path) ---------------
def prepare_resblock_params(dw_w, dw_b, pw_w, pw_b, prelu, gamma, beta):
    """Pack PyTorch-shaped params once; outputs feed the hot-path kernel."""
    dw = dw_w[:, :, 0, :, :].astype(jnp.float32)        # (5, ci, kh, kw)
    pw = pw_w[:, :, :, 0, 0].astype(jnp.float32)        # (5, co, ci)

    # Combined per-(kh,kw) channel block: blk[l, kh, kw, ci, co] = dw * pw
    blk = jnp.einsum('lchw,loc->lhwco', dw, pw)         # (5,3,3,C,C)

    # kw dilation bands + zero-padding boundaries as a selector matrix:
    # sel[l, kw, w_in, w_out] = 1 iff w_in == w_out + (kw-1)*d_l and in range.
    w_out = jnp.arange(W)
    w_grid = jnp.arange(W)
    sel_layers = []
    for d in DILATIONS:
        bands = []
        for kw in range(3):
            w_in = w_out + (kw - 1) * d
            valid = (w_in >= 0) & (w_in < W)
            bands.append(((w_grid[:, None] == w_in[None, :]) &
                          valid[None, :]).astype(jnp.float32))
        sel_layers.append(jnp.stack(bands, 0))
    sel = jnp.stack(sel_layers, 0)                      # (5, 3, W, W)

    # Folded weight: wfold[l, kh, w_in, ci, w_out, co] -> (5, 3*W*C, W*C)
    wfold = jnp.einsum('lwab,lhwco->lhacbo', sel, blk).reshape(5, K3, L)

    # Depthwise bias folded through the linear 1x1 conv + pointwise bias.
    fb = jnp.einsum('loc,lc->lo', pw, dw_b.astype(jnp.float32)) \
        + pw_b.astype(jnp.float32)                      # (5, C)
    fb_pk = jnp.tile(fb, (1, W))                        # (5, 128)
    gamma_pk = jnp.tile(gamma.astype(jnp.float32), (1, W))
    beta_pk = jnp.tile(beta.astype(jnp.float32), (1, W))
    prelu_s = prelu.reshape(1, 1).astype(jnp.float32)
    return prelu_s, wfold, fb_pk, gamma_pk, beta_pk


# --------------------- packed-layout helpers (network boundaries) -----------
def pack_nchw(x_nchw):
    return jnp.transpose(x_nchw, (0, 2, 3, 1)).reshape(R, L)


def unpack_nchw(x_pk):
    return jnp.transpose(x_pk.reshape(N, H, W, C), (0, 3, 1, 2))


# --------------------- hot path: packed in, packed out ----------------------
@jax.jit
def resblock_pallas_packed(x_pk, prelu_s, wfold, fb_pk, gamma_pk, beta_pk):
    vmem = lambda: pl.BlockSpec(memory_space=pltpu.MemorySpace.VMEM)
    smem = pl.BlockSpec(memory_space=pltpu.MemorySpace.SMEM)
    return pl.pallas_call(
        resblock_kernel,
        out_shape=jax.ShapeDtypeStruct((R, L), jnp.float32),  # lane-dense out
        in_specs=[smem, vmem(), vmem(), vmem(), vmem(), vmem()],
        out_specs=vmem(),
    )(prelu_s, x_pk, wfold, fb_pk, gamma_pk, beta_pk)


# ----------------------- pure-JAX reference (for checking) ------------------
def ref_resblock(x_nchw, dw_w, dw_b, pw_w, pw_b, prelu, gamma, beta):
    x = jnp.transpose(x_nchw, (0, 2, 3, 1))                        # NHWC

    def layer(h, i):
        d = DILATIONS[i]
        k = jnp.transpose(dw_w[i], (2, 3, 1, 0))                   # (3,3,1,C)
        y = lax.conv_general_dilated(
            h, k, window_strides=(1, 1), padding=((1, 1), (d, d)),
            rhs_dilation=(1, d),
            dimension_numbers=('NHWC', 'HWIO', 'NHWC'),
            feature_group_count=C, precision=lax.Precision.HIGHEST)
        y = y + dw_b[i]
        y = jnp.einsum('nhwc,oc->nhwo', y, pw_w[i, :, :, 0, 0],
                       precision=lax.Precision.HIGHEST) + pw_b[i]
        a = prelu[0]
        y = jnp.where(y >= 0.0, y, a * y)
        mean = jnp.mean(y, axis=(0, 1, 2), keepdims=True)
        var = jnp.mean((y - mean) ** 2, axis=(0, 1, 2), keepdims=True)
        return gamma[i] * (y - mean) * lax.rsqrt(var + BN_EPS) + beta[i]

    r = layer(x, 0)
    for i in range(1, 5):
        r = r + layer(r, i)
    return jnp.transpose(r, (0, 3, 1, 2))                          # NCHW


if __name__ == "__main__":
    key = jax.random.PRNGKey(0)
    k = jax.random.split(key, 7)
    # Deterministic synthetic parameters (shapes per ResBlock.__init__):
    #   5 x depthwise Conv2d(C, C, 3, groups=C): weight (C,1,3,3), bias (C,)
    #   5 x pointwise Conv2d(C, C, 1):           weight (C,C,1,1), bias (C,)
    #   1 shared PReLU scalar (init 0.25), 5 x BatchNorm2d(C) affine params.
    dw_w = (0.3 * jax.random.normal(k[0], (5, C, 1, 3, 3))).astype(jnp.float32)
    dw_b = (0.1 * jax.random.normal(k[1], (5, C))).astype(jnp.float32)
    pw_w = (0.3 * jax.random.normal(k[2], (5, C, C, 1, 1))).astype(jnp.float32)
    pw_b = (0.1 * jax.random.normal(k[3], (5, C))).astype(jnp.float32)
    prelu = jnp.full((1,), 0.25, dtype=jnp.float32)
    gamma = (1.0 + 0.1 * jax.random.normal(k[4], (5, C))).astype(jnp.float32)
    beta = (0.1 * jax.random.normal(k[5], (5, C))).astype(jnp.float32)
    x = jax.random.normal(k[6], (N, C, H, W), dtype=jnp.float32)

    # One-time packing (cold path, hoisted out of the per-call hot path).
    params = jax.block_until_ready(
        prepare_resblock_params(dw_w, dw_b, pw_w, pw_b, prelu, gamma, beta))

    # Hot path: packed activations in, packed activations out.
    x_pk = pack_nchw(x)
    out_pk = jax.block_until_ready(resblock_pallas_packed(x_pk, *params))
    out = unpack_nchw(out_pk)

    ref = ref_resblock(x, dw_w, dw_b, pw_w, pw_b, prelu, gamma, beta)
    assert out.shape == (N, C, H, W)
    err = jnp.max(jnp.abs(out - ref))
    assert jnp.allclose(out, ref, atol=2e-3, rtol=2e-3), f"max abs err = {err}"
    print("KERNEL_OK")
</pallas_src>

<mosaic_0001>
module attributes {stable_mosaic.version = 11 : i64} {
  func.func @resblock_kernel(%arg0: memref<1x1xf32, #tpu.memory_space<smem>>, %arg1: memref<32x128xf32, #tpu.memory_space<vmem>>, %arg2: memref<5x384x128xf32, #tpu.memory_space<vmem>>, %arg3: memref<5x128xf32, #tpu.memory_space<vmem>>, %arg4: memref<5x128xf32, #tpu.memory_space<vmem>>, %arg5: memref<5x128xf32, #tpu.memory_space<vmem>>, %arg6: memref<32x128xf32, #tpu.memory_space<vmem>>) attributes {dimension_semantics = [], scalar_prefetch = 0 : i64, scratch_operands = 0 : i64, tpu.core_type = #tpu.core_type<tc>} {
    %c0 = arith.constant 0 : index
    %c0_0 = arith.constant 0 : index
    %0 = memref.load %arg0[%c0, %c0_0] : memref<1x1xf32, #tpu.memory_space<smem>>
    %1 = tpu.iota {dimensions = array<i32: 0>} : vector<32x128xi32>
    %c16_i32 = arith.constant 16 : i32
    %c0_i32 = arith.constant 0 : i32
    %2 = arith.cmpi eq, %c16_i32, %c0_i32 : i32
    %c1_i32 = arith.constant 1 : i32
    %3 = arith.select %2, %c1_i32, %c16_i32 : i32
    %4 = vector.broadcast %3 : i32 to vector<32x128xi32>
    %5 = arith.remsi %1, %4 : vector<32x128xi32>
    %c0_i32_1 = arith.constant 0 : i32
    %6 = vector.broadcast %c0_i32_1 : i32 to vector<32x128xi32>
    %7 = arith.cmpi ne, %5, %6 : vector<32x128xi32>
    %c0_i32_2 = arith.constant 0 : i32
    %8 = vector.broadcast %c0_i32_2 : i32 to vector<32x128xi32>
    %9 = arith.cmpi slt, %5, %8 : vector<32x128xi32>
    %c0_i32_3 = arith.constant 0 : i32
    %10 = arith.cmpi slt, %3, %c0_i32_3 : i32
    %11 = vector.broadcast %10 : i1 to vector<32x128xi1>
    %12 = vector.broadcast %11 : vector<32x128xi1> to vector<32x128xi1>
    %13 = arith.xori %9, %12 : vector<32x128xi1>
    %14 = arith.andi %13, %7 : vector<32x128xi1>
    %15 = vector.broadcast %3 : i32 to vector<32x128xi32>
    %16 = arith.addi %5, %15 : vector<32x128xi32>
    %17 = arith.select %14, %16, %5 : vector<32x128xi1>, vector<32x128xi32>
    %c0_i32_4 = arith.constant 0 : i32
    %18 = vector.broadcast %c0_i32_4 : i32 to vector<32x128xi32>
    %19 = arith.cmpi sgt, %17, %18 : vector<32x128xi32>
    %c15_i32 = arith.constant 15 : i32
    %20 = vector.broadcast %c15_i32 : i32 to vector<32x128xi32>
    %21 = arith.cmpi slt, %17, %20 : vector<32x128xi32>
    %c0_5 = arith.constant 0 : index
    %c0_6 = arith.constant 0 : index
    %22 = vector.load %arg1[%c0_5, %c0_6] : memref<32x128xf32, #tpu.memory_space<vmem>>, vector<32x128xf32>
    %c1_i32_7 = arith.constant 1 : i32
    %23 = tpu.dynamic_rotate %22 by %c1_i32_7 dim 0 : vector<32x128xf32>, i32 -> vector<32x128xf32>
    %cst = arith.constant 0.000000e+00 : f32
    %24 = vector.broadcast %cst : f32 to vector<32x128xf32>
    %25 = arith.select %19, %23, %24 : vector<32x128xi1>, vector<32x128xf32>
    %c31_i32 = arith.constant 31 : i32
    %26 = tpu.dynamic_rotate %22 by %c31_i32 dim 0 : vector<32x128xf32>, i32 -> vector<32x128xf32>
    %cst_8 = arith.constant 0.000000e+00 : f32
    %27 = vector.broadcast %cst_8 : f32 to vector<32x128xf32>
    %28 = arith.select %21, %26, %27 : vector<32x128xi1>, vector<32x128xf32>
    %29 = tpu.concatenate %25, %22, %28 in 1 : vector<32x128xf32>, vector<32x128xf32>, vector<32x128xf32> -> vector<32x384xf32>
    %c0_9 = arith.constant 0 : index
    %c0_10 = arith.constant 0 : index
    %c0_11 = arith.constant 0 : index
    %30 = vector.load %arg2[%c0_9, %c0_10, %c0_11] : memref<5x384x128xf32, #tpu.memory_space<vmem>>, vector<1x384x128xf32>
    %31 = vector.shape_cast %30 : vector<1x384x128xf32> to vector<384x128xf32>
    %cst_12 = arith.constant dense<0.000000e+00> : vector<32x128xf32>
    %32 = tpu.matmul %29, %31, %cst_12 {dimension_numbers = #tpu.dot_dimension_numbers<[1], [0], [0], [1], [0, 0, 1, 1], [], []>} : vector<32x384xf32>, vector<384x128xf32>, vector<32x128xf32> -> vector<32x128xf32>
    %c0_13 = arith.constant 0 : index
    %c0_14 = arith.constant 0 : index
    %33 = vector.load %arg3[%c0_13, %c0_14] : memref<5x128xf32, #tpu.memory_space<vmem>>, vector<1x128xf32>
    %34 = vector.broadcast %33 : vector<1x128xf32> to vector<32x128xf32>
    %35 = arith.addf %32, %34 : vector<32x128xf32>
    %cst_15 = arith.constant 0.000000e+00 : f32
    %36 = vector.broadcast %cst_15 : f32 to vector<32x128xf32>
    %37 = arith.cmpf oge, %35, %36 : vector<32x128xf32>
    %38 = vector.broadcast %0 : f32 to vector<32x128xf32>
    %39 = arith.mulf %35, %38 : vector<32x128xf32>
    %40 = arith.select %37, %35, %39 : vector<32x128xi1>, vector<32x128xf32>
    %cst_16 = arith.constant dense<0.000000e+00> : vector<128xf32>
    %41 = vector.multi_reduction <add>, %40, %cst_16 [0] : vector<32x128xf32> to vector<128xf32>
    %42 = vector.shape_cast %41 : vector<128xf32> to vector<1x128xf32>
    %43 = arith.mulf %40, %40 : vector<32x128xf32>
    %cst_17 = arith.constant dense<0.000000e+00> : vector<128xf32>
    %44 = vector.multi_reduction <add>, %43, %cst_17 [0] : vector<32x128xf32> to vector<128xf32>
    %45 = vector.shape_cast %44 : vector<128xf32> to vector<1x128xf32>
    %46 = tpu.concatenate %42, %45 in 0 : vector<1x128xf32>, vector<1x128xf32> -> vector<2x128xf32>
    %c8_i32 = arith.constant 8 : i32
    %47 = tpu.dynamic_rotate %46 by %c8_i32 dim 1 : vector<2x128xf32>, i32 -> vector<2x128xf32>
    %48 = arith.addf %46, %47 : vector<2x128xf32>
    %c16_i32_18 = arith.constant 16 : i32
    %49 = tpu.dynamic_rotate %48 by %c16_i32_18 dim 1 : vector<2x128xf32>, i32 -> vector<2x128xf32>
    %50 = arith.addf %48, %49 : vector<2x128xf32>
    %c32_i32 = arith.constant 32 : i32
    %51 = tpu.dynamic_rotate %50 by %c32_i32 dim 1 : vector<2x128xf32>, i32 -> vector<2x128xf32>
    %52 = arith.addf %50, %51 : vector<2x128xf32>
    %c64_i32 = arith.constant 64 : i32
    %53 = tpu.dynamic_rotate %52 by %c64_i32 dim 1 : vector<2x128xf32>, i32 -> vector<2x128xf32>
    %54 = arith.addf %52, %53 : vector<2x128xf32>
    %55 = vector.extract_strided_slice %54 {offsets = [0, 0], sizes = [1, 128], strides = [1, 1]} : vector<2x128xf32> to vector<1x128xf32>
    %cst_19 = arith.constant 0.001953125 : f32
    %56 = vector.broadcast %cst_19 : f32 to vector<1x128xf32>
    %57 = arith.mulf %55, %56 : vector<1x128xf32>
    %58 = vector.extract_strided_slice %54 {offsets = [1, 0], sizes = [1, 128], strides = [1, 1]} : vector<2x128xf32> to vector<1x128xf32>
    %cst_20 = arith.constant 0.001953125 : f32
    %59 = vector.broadcast %cst_20 : f32 to vector<1x128xf32>
    %60 = arith.mulf %58, %59 : vector<1x128xf32>
    %61 = arith.mulf %57, %57 : vector<1x128xf32>
    %62 = arith.subf %60, %61 : vector<1x128xf32>
    %c0_21 = arith.constant 0 : index
    %c0_22 = arith.constant 0 : index
    %63 = vector.load %arg4[%c0_21, %c0_22] : memref<5x128xf32, #tpu.memory_space<vmem>>, vector<1x128xf32>
    %cst_23 = arith.constant 9.99999974E-6 : f32
    %64 = vector.broadcast %cst_23 : f32 to vector<1x128xf32>
    %65 = arith.addf %62, %64 : vector<1x128xf32>
    %66 = math.rsqrt %65 : vector<1x128xf32>
    %67 = arith.mulf %63, %66 : vector<1x128xf32>
    %c0_24 = arith.constant 0 : index
    %c0_25 = arith.constant 0 : index
    %68 = vector.load %arg5[%c0_24, %c0_25] : memref<5x128xf32, #tpu.memory_space<vmem>>, vector<1x128xf32>
    %69 = arith.mulf %57, %67 : vector<1x128xf32>
    %70 = arith.subf %68, %69 : vector<1x128xf32>
    %71 = vector.broadcast %67 : vector<1x128xf32> to vector<32x128xf32>
    %72 = arith.mulf %40, %71 : vector<32x128xf32>
    %73 = vector.broadcast %70 : vector<1x128xf32> to vector<32x128xf32>
    %74 = arith.addf %72, %73 : vector<32x128xf32>
    %c1_i32_26 = arith.constant 1 : i32
    %75 = tpu.dynamic_rotate %74 by %c1_i32_26 dim 0 : vector<32x128xf32>, i32 -> vector<32x128xf32>
    %cst_27 = arith.constant 0.000000e+00 : f32
    %76 = vector.broadcast %cst_27 : f32 to vector<32x128xf32>
    %77 = arith.select %19, %75, %76 : vector<32x128xi1>, vector<32x128xf32>
    %c31_i32_28 = arith.constant 31 : i32
    %78 = tpu.dynamic_rotate %74 by %c31_i32_28 dim 0 : vector<32x128xf32>, i32 -> vector<32x128xf32>
    %cst_29 = arith.constant 0.000000e+00 : f32
    %79 = vector.broadcast %cst_29 : f32 to vector<32x128xf32>
    %80 = arith.select %21, %78, %79 : vector<32x128xi1>, vector<32x128xf32>
    %81 = tpu.concatenate %77, %74, %80 in 1 : vector<32x128xf32>, vector<32x128xf32>, vector<32x128xf32> -> vector<32x384xf32>
    %c1 = arith.constant 1 : index
    %c0_30 = arith.constant 0 : index
    %c0_31 = arith.constant 0 : index
    %82 = vector.load %arg2[%c1, %c0_30, %c0_31] : memref<5x384x128xf32, #tpu.memory_space<vmem>>, vector<1x384x128xf32>
    %83 = vector.shape_cast %82 : vector<1x384x128xf32> to vector<384x128xf32>
    %cst_32 = arith.constant dense<0.000000e+00> : vector<32x128xf32>
    %84 = tpu.matmul %81, %83, %cst_32 {dimension_numbers = #tpu.dot_dimension_numbers<[1], [0], [0], [1], [0, 0, 1, 1], [], []>} : vector<32x384xf32>, vector<384x128xf32>, vector<32x128xf32> -> vector<32x128xf32>
    %c1_33 = arith.constant 1 : index
    %c0_34 = arith.constant 0 : index
    %85 = vector.load %arg3[%c1_33, %c0_34] : memref<5x128xf32, #tpu.memory_space<vmem>>, vector<1x128xf32>
    %86 = vector.broadcast %85 : vector<1x128xf32> to vector<32x128xf32>
    %87 = arith.addf %84, %86 : vector<32x128xf32>
    %cst_35 = arith.constant 0.000000e+00 : f32
    %88 = vector.broadcast %cst_35 : f32 to vector<32x128xf32>
    %89 = arith.cmpf oge, %87, %88 : vector<32x128xf32>
    %90 = vector.broadcast %0 : f32 to vector<32x128xf32>
    %91 = arith.mulf %87, %90 : vector<32x128xf32>
    %92 = arith.select %89, %87, %91 : vector<32x128xi1>, vector<32x128xf32>
    %cst_36 = arith.constant dense<0.000000e+00> : vector<128xf32>
    %93 = vector.multi_reduction <add>, %92, %cst_36 [0] : vector<32x128xf32> to vector<128xf32>
    %94 = vector.shape_cast %93 : vector<128xf32> to vector<1x128xf32>
    %95 = arith.mulf %92, %92 : vector<32x128xf32>
    %cst_37 = arith.constant dense<0.000000e+00> : vector<128xf32>
    %96 = vector.multi_reduction <add>, %95, %cst_37 [0] : vector<32x128xf32> to vector<128xf32>
    %97 = vector.shape_cast %96 : vector<128xf32> to vector<1x128xf32>
    %98 = tpu.concatenate %94, %97 in 0 : vector<1x128xf32>, vector<1x128xf32> -> vector<2x128xf32>
    %c8_i32_38 = arith.constant 8 : i32
    %99 = tpu.dynamic_rotate %98 by %c8_i32_38 dim 1 : vector<2x128xf32>, i32 -> vector<2x128xf32>
    %100 = arith.addf %98, %99 : vector<2x128xf32>
    %c16_i32_39 = arith.constant 16 : i32
    %101 = tpu.dynamic_rotate %100 by %c16_i32_39 dim 1 : vector<2x128xf32>, i32 -> vector<2x128xf32>
    %102 = arith.addf %100, %101 : vector<2x128xf32>
    %c32_i32_40 = arith.constant 32 : i32
    %103 = tpu.dynamic_rotate %102 by %c32_i32_40 dim 1 : vector<2x128xf32>, i32 -> vector<2x128xf32>
    %104 = arith.addf %102, %103 : vector<2x128xf32>
    %c64_i32_41 = arith.constant 64 : i32
    %105 = tpu.dynamic_rotate %104 by %c64_i32_41 dim 1 : vector<2x128xf32>, i32 -> vector<2x128xf32>
    %106 = arith.addf %104, %105 : vector<2x128xf32>
    %107 = vector.extract_strided_slice %106 {offsets = [0, 0], sizes = [1, 128], strides = [1, 1]} : vector<2x128xf32> to vector<1x128xf32>
    %cst_42 = arith.constant 0.001953125 : f32
    %108 = vector.broadcast %cst_42 : f32 to vector<1x128xf32>
    %109 = arith.mulf %107, %108 : vector<1x128xf32>
    %110 = vector.extract_strided_slice %106 {offsets = [1, 0], sizes = [1, 128], strides = [1, 1]} : vector<2x128xf32> to vector<1x128xf32>
    %cst_43 = arith.constant 0.001953125 : f32
    %111 = vector.broadcast %cst_43 : f32 to vector<1x128xf32>
    %112 = arith.mulf %110, %111 : vector<1x128xf32>
    %113 = arith.mulf %109, %109 : vector<1x128xf32>
    %114 = arith.subf %112, %113 : vector<1x128xf32>
    %c1_44 = arith.constant 1 : index
    %c0_45 = arith.constant 0 : index
    %115 = vector.load %arg4[%c1_44, %c0_45] : memref<5x128xf32, #tpu.memory_space<vmem>>, vector<1x128xf32>
    %cst_46 = arith.constant 9.99999974E-6 : f32
    %116 = vector.broadcast %cst_46 : f32 to vector<1x128xf32>
    %117 = arith.addf %114, %116 : vector<1x128xf32>
    %118 = math.rsqrt %117 : vector<1x128xf32>
    %119 = arith.mulf %115, %118 : vector<1x128xf32>
    %c1_47 = arith.constant 1 : index
    %c0_48 = arith.constant 0 : index
    %120 = vector.load %arg5[%c1_47, %c0_48] : memref<5x128xf32, #tpu.memory_space<vmem>>, vector<1x128xf32>
    %121 = arith.mulf %109, %119 : vector<1x128xf32>
    %122 = arith.subf %120, %121 : vector<1x128xf32>
    %123 = vector.broadcast %119 : vector<1x128xf32> to vector<32x128xf32>
    %124 = arith.mulf %92, %123 : vector<32x128xf32>
    %125 = vector.broadcast %122 : vector<1x128xf32> to vector<32x128xf32>
    %126 = arith.addf %124, %125 : vector<32x128xf32>
    %127 = arith.addf %74, %126 : vector<32x128xf32>
    %c1_i32_49 = arith.constant 1 : i32
    %128 = tpu.dynamic_rotate %127 by %c1_i32_49 dim 0 : vector<32x128xf32>, i32 -> vector<32x128xf32>
    %cst_50 = arith.constant 0.000000e+00 : f32
    %129 = vector.broadcast %cst_50 : f32 to vector<32x128xf32>
    %130 = arith.select %19, %128, %129 : vector<32x128xi1>, vector<32x128xf32>
    %c31_i32_51 = arith.constant 31 : i32
    %131 = tpu.dynamic_rotate %127 by %c31_i32_51 dim 0 : vector<32x128xf32>, i32 -> vector<32x128xf32>
    %cst_52 = arith.constant 0.000000e+00 : f32
    %132 = vector.broadcast %cst_52 : f32 to vector<32x128xf32>
    %133 = arith.select %21, %131, %132 : vector<32x128xi1>, vector<32x128xf32>
    %134 = tpu.concatenate %130, %127, %133 in 1 : vector<32x128xf32>, vector<32x128xf32>, vector<32x128xf32> -> vector<32x384xf32>
    %c2 = arith.constant 2 : index
    %c0_53 = arith.constant 0 : index
    %c0_54 = arith.constant 0 : index
    %135 = vector.load %arg2[%c2, %c0_53, %c0_54] : memref<5x384x128xf32, #tpu.memory_space<vmem>>, vector<1x384x128xf32>
    %136 = vector.shape_cast %135 : vector<1x384x128xf32> to vector<384x128xf32>
    %cst_55 = arith.constant dense<0.000000e+00> : vector<32x128xf32>
    %137 = tpu.matmul %134, %136, %cst_55 {dimension_numbers = #tpu.dot_dimension_numbers<[1], [0], [0], [1], [0, 0, 1, 1], [], []>} : vector<32x384xf32>, vector<384x128xf32>, vector<32x128xf32> -> vector<32x128xf32>
    %c2_56 = arith.constant 2 : index
    %c0_57 = arith.constant 0 : index
    %138 = vector.load %arg3[%c2_56, %c0_57] : memref<5x128xf32, #tpu.memory_space<vmem>>, vector<1x128xf32>
    %139 = vector.broadcast %138 : vector<1x128xf32> to vector<32x128xf32>
    %140 = arith.addf %137, %139 : vector<32x128xf32>
    %cst_58 = arith.constant 0.000000e+00 : f32
    %141 = vector.broadcast %cst_58 : f32 to vector<32x128xf32>
    %142 = arith.cmpf oge, %140, %141 : vector<32x128xf32>
    %143 = vector.broadcast %0 : f32 to vector<32x128xf32>
    %144 = arith.mulf %140, %143 : vector<32x128xf32>
    %145 = arith.select %142, %140, %144 : vector<32x128xi1>, vector<32x128xf32>
    %cst_59 = arith.constant dense<0.000000e+00> : vector<128xf32>
    %146 = vector.multi_reduction <add>, %145, %cst_59 [0] : vector<32x128xf32> to vector<128xf32>
    %147 = vector.shape_cast %146 : vector<128xf32> to vector<1x128xf32>
    %148 = arith.mulf %145, %145 : vector<32x128xf32>
    %cst_60 = arith.constant dense<0.000000e+00> : vector<128xf32>
    %149 = vector.multi_reduction <add>, %148, %cst_60 [0] : vector<32x128xf32> to vector<128xf32>
    %150 = vector.shape_cast %149 : vector<128xf32> to vector<1x128xf32>
    %151 = tpu.concatenate %147, %150 in 0 : vector<1x128xf32>, vector<1x128xf32> -> vector<2x128xf32>
    %c8_i32_61 = arith.constant 8 : i32
    %152 = tpu.dynamic_rotate %151 by %c8_i32_61 dim 1 : vector<2x128xf32>, i32 -> vector<2x128xf32>
    %153 = arith.addf %151, %152 : vector<2x128xf32>
    %c16_i32_62 = arith.constant 16 : i32
    %154 = tpu.dynamic_rotate %153 by %c16_i32_62 dim 1 : vector<2x128xf32>, i32 -> vector<2x128xf32>
    %155 = arith.addf %153, %154 : vector<2x128xf32>
    %c32_i32_63 = arith.constant 32 : i32
    %156 = tpu.dynamic_rotate %155 by %c32_i32_63 dim 1 : vector<2x128xf32>, i32 -> vector<2x128xf32>
    %157 = arith.addf %155, %156 : vector<2x128xf32>
    %c64_i32_64 = arith.constant 64 : i32
    %158 = tpu.dynamic_rotate %157 by %c64_i32_64 dim 1 : vector<2x128xf32>, i32 -> vector<2x128xf32>
    %159 = arith.addf %157, %158 : vector<2x128xf32>
    %160 = vector.extract_strided_slice %159 {offsets = [0, 0], sizes = [1, 128], strides = [1, 1]} : vector<2x128xf32> to vector<1x128xf32>
    %cst_65 = arith.constant 0.001953125 : f32
    %161 = vector.broadcast %cst_65 : f32 to vector<1x128xf32>
    %162 = arith.mulf %160, %161 : vector<1x128xf32>
    %163 = vector.extract_strided_slice %159 {offsets = [1, 0], sizes = [1, 128], strides = [1, 1]} : vector<2x128xf32> to vector<1x128xf32>
    %cst_66 = arith.constant 0.001953125 : f32
    %164 = vector.broadcast %cst_66 : f32 to vector<1x128xf32>
    %165 = arith.mulf %163, %164 : vector<1x128xf32>
    %166 = arith.mulf %162, %162 : vector<1x128xf32>
    %167 = arith.subf %165, %166 : vector<1x128xf32>
    %c2_67 = arith.constant 2 : index
    %c0_68 = arith.constant 0 : index
    %168 = vector.load %arg4[%c2_67, %c0_68] : memref<5x128xf32, #tpu.memory_space<vmem>>, vector<1x128xf32>
    %cst_69 = arith.constant 9.99999974E-6 : f32
    %169 = vector.broadcast %cst_69 : f32 to vector<1x128xf32>
    %170 = arith.addf %167, %169 : vector<1x128xf32>
    %171 = math.rsqrt %170 : vector<1x128xf32>
    %172 = arith.mulf %168, %171 : vector<1x128xf32>
    %c2_70 = arith.constant 2 : index
    %c0_71 = arith.constant 0 : index
    %173 = vector.load %arg5[%c2_70, %c0_71] : memref<5x128xf32, #tpu.memory_space<vmem>>, vector<1x128xf32>
    %174 = arith.mulf %162, %172 : vector<1x128xf32>
    %175 = arith.subf %173, %174 : vector<1x128xf32>
    %176 = vector.broadcast %172 : vector<1x128xf32> to vector<32x128xf32>
    %177 = arith.mulf %145, %176 : vector<32x128xf32>
    %178 = vector.broadcast %175 : vector<1x128xf32> to vector<32x128xf32>
    %179 = arith.addf %177, %178 : vector<32x128xf32>
    %180 = arith.addf %127, %179 : vector<32x128xf32>
    %c1_i32_72 = arith.constant 1 : i32
    %181 = tpu.dynamic_rotate %180 by %c1_i32_72 dim 0 : vector<32x128xf32>, i32 -> vector<32x128xf32>
    %cst_73 = arith.constant 0.000000e+00 : f32
    %182 = vector.broadcast %cst_73 : f32 to vector<32x128xf32>
    %183 = arith.select %19, %181, %182 : vector<32x128xi1>, vector<32x128xf32>
    %c31_i32_74 = arith.constant 31 : i32
    %184 = tpu.dynamic_rotate %180 by %c31_i32_74 dim 0 : vector<32x128xf32>, i32 -> vector<32x128xf32>
    %cst_75 = arith.constant 0.000000e+00 : f32
    %185 = vector.broadcast %cst_75 : f32 to vector<32x128xf32>
    %186 = arith.select %21, %184, %185 : vector<32x128xi1>, vector<32x128xf32>
    %187 = tpu.concatenate %183, %180, %186 in 1 : vector<32x128xf32>, vector<32x128xf32>, vector<32x128xf32> -> vector<32x384xf32>
    %c3 = arith.constant 3 : index
    %c0_76 = arith.constant 0 : index
    %c0_77 = arith.constant 0 : index
    %188 = vector.load %arg2[%c3, %c0_76, %c0_77] : memref<5x384x128xf32, #tpu.memory_space<vmem>>, vector<1x384x128xf32>
    %189 = vector.shape_cast %188 : vector<1x384x128xf32> to vector<384x128xf32>
    %cst_78 = arith.constant dense<0.000000e+00> : vector<32x128xf32>
    %190 = tpu.matmul %187, %189, %cst_78 {dimension_numbers = #tpu.dot_dimension_numbers<[1], [0], [0], [1], [0, 0, 1, 1], [], []>} : vector<32x384xf32>, vector<384x128xf32>, vector<32x128xf32> -> vector<32x128xf32>
    %c3_79 = arith.constant 3 : index
    %c0_80 = arith.constant 0 : index
    %191 = vector.load %arg3[%c3_79, %c0_80] : memref<5x128xf32, #tpu.memory_space<vmem>>, vector<1x128xf32>
    %192 = vector.broadcast %191 : vector<1x128xf32> to vector<32x128xf32>
    %193 = arith.addf %190, %192 : vector<32x128xf32>
    %cst_81 = arith.constant 0.000000e+00 : f32
    %194 = vector.broadcast %cst_81 : f32 to vector<32x128xf32>
    %195 = arith.cmpf oge, %193, %194 : vector<32x128xf32>
    %196 = vector.broadcast %0 : f32 to vector<32x128xf32>
    %197 = arith.mulf %193, %196 : vector<32x128xf32>
    %198 = arith.select %195, %193, %197 : vector<32x128xi1>, vector<32x128xf32>
    %cst_82 = arith.constant dense<0.000000e+00> : vector<128xf32>
    %199 = vector.multi_reduction <add>, %198, %cst_82 [0] : vector<32x128xf32> to vector<128xf32>
    %200 = vector.shape_cast %199 : vector<128xf32> to vector<1x128xf32>
    %201 = arith.mulf %198, %198 : vector<32x128xf32>
    %cst_83 = arith.constant dense<0.000000e+00> : vector<128xf32>
    %202 = vector.multi_reduction <add>, %201, %cst_83 [0] : vector<32x128xf32> to vector<128xf32>
    %203 = vector.shape_cast %202 : vector<128xf32> to vector<1x128xf32>
    %204 = tpu.concatenate %200, %203 in 0 : vector<1x128xf32>, vector<1x128xf32> -> vector<2x128xf32>
    %c8_i32_84 = arith.constant 8 : i32
    %205 = tpu.dynamic_rotate %204 by %c8_i32_84 dim 1 : vector<2x128xf32>, i32 -> vector<2x128xf32>
    %206 = arith.addf %204, %205 : vector<2x128xf32>
    %c16_i32_85 = arith.constant 16 : i32
    %207 = tpu.dynamic_rotate %206 by %c16_i32_85 dim 1 : vector<2x128xf32>, i32 -> vector<2x128xf32>
    %208 = arith.addf %206, %207 : vector<2x128xf32>
    %c32_i32_86 = arith.constant 32 : i32
    %209 = tpu.dynamic_rotate %208 by %c32_i32_86 dim 1 : vector<2x128xf32>, i32 -> vector<2x128xf32>
    %210 = arith.addf %208, %209 : vector<2x128xf32>
    %c64_i32_87 = arith.constant 64 : i32
    %211 = tpu.dynamic_rotate %210 by %c64_i32_87 dim 1 : vector<2x128xf32>, i32 -> vector<2x128xf32>
    %212 = arith.addf %210, %211 : vector<2x128xf32>
    %213 = vector.extract_strided_slice %212 {offsets = [0, 0], sizes = [1, 128], strides = [1, 1]} : vector<2x128xf32> to vector<1x128xf32>
    %cst_88 = arith.constant 0.001953125 : f32
    %214 = vector.broadcast %cst_88 : f32 to vector<1x128xf32>
    %215 = arith.mulf %213, %214 : vector<1x128xf32>
    %216 = vector.extract_strided_slice %212 {offsets = [1, 0], sizes = [1, 128], strides = [1, 1]} : vector<2x128xf32> to vector<1x128xf32>
    %cst_89 = arith.constant 0.001953125 : f32
    %217 = vector.broadcast %cst_89 : f32 to vector<1x128xf32>
    %218 = arith.mulf %216, %217 : vector<1x128xf32>
    %219 = arith.mulf %215, %215 : vector<1x128xf32>
    %220 = arith.subf %218, %219 : vector<1x128xf32>
    %c3_90 = arith.constant 3 : index
    %c0_91 = arith.constant 0 : index
    %221 = vector.load %arg4[%c3_90, %c0_91] : memref<5x128xf32, #tpu.memory_space<vmem>>, vector<1x128xf32>
    %cst_92 = arith.constant 9.99999974E-6 : f32
    %222 = vector.broadcast %cst_92 : f32 to vector<1x128xf32>
    %223 = arith.addf %220, %222 : vector<1x128xf32>
    %224 = math.rsqrt %223 : vector<1x128xf32>
    %225 = arith.mulf %221, %224 : vector<1x128xf32>
    %c3_93 = arith.constant 3 : index
    %c0_94 = arith.constant 0 : index
    %226 = vector.load %arg5[%c3_93, %c0_94] : memref<5x128xf32, #tpu.memory_space<vmem>>, vector<1x128xf32>
    %227 = arith.mulf %215, %225 : vector<1x128xf32>
    %228 = arith.subf %226, %227 : vector<1x128xf32>
    %229 = vector.broadcast %225 : vector<1x128xf32> to vector<32x128xf32>
    %230 = arith.mulf %198, %229 : vector<32x128xf32>
    %231 = vector.broadcast %228 : vector<1x128xf32> to vector<32x128xf32>
    %232 = arith.addf %230, %231 : vector<32x128xf32>
    %233 = arith.addf %180, %232 : vector<32x128xf32>
    %c1_i32_95 = arith.constant 1 : i32
    %234 = tpu.dynamic_rotate %233 by %c1_i32_95 dim 0 : vector<32x128xf32>, i32 -> vector<32x128xf32>
    %cst_96 = arith.constant 0.000000e+00 : f32
    %235 = vector.broadcast %cst_96 : f32 to vector<32x128xf32>
    %236 = arith.select %19, %234, %235 : vector<32x128xi1>, vector<32x128xf32>
    %c31_i32_97 = arith.constant 31 : i32
    %237 = tpu.dynamic_rotate %233 by %c31_i32_97 dim 0 : vector<32x128xf32>, i32 -> vector<32x128xf32>
    %cst_98 = arith.constant 0.000000e+00 : f32
    %238 = vector.broadcast %cst_98 : f32 to vector<32x128xf32>
    %239 = arith.select %21, %237, %238 : vector<32x128xi1>, vector<32x128xf32>
    %240 = tpu.concatenate %236, %233, %239 in 1 : vector<32x128xf32>, vector<32x128xf32>, vector<32x128xf32> -> vector<32x384xf32>
    %c4 = arith.constant 4 : index
    %c0_99 = arith.constant 0 : index
    %c0_100 = arith.constant 0 : index
    %241 = vector.load %arg2[%c4, %c0_99, %c0_100] : memref<5x384x128xf32, #tpu.memory_space<vmem>>, vector<1x384x128xf32>
    %242 = vector.shape_cast %241 : vector<1x384x128xf32> to vector<384x128xf32>
    %cst_101 = arith.constant dense<0.000000e+00> : vector<32x128xf32>
    %243 = tpu.matmul %240, %242, %cst_101 {dimension_numbers = #tpu.dot_dimension_numbers<[1], [0], [0], [1], [0, 0, 1, 1], [], []>} : vector<32x384xf32>, vector<384x128xf32>, vector<32x128xf32> -> vector<32x128xf32>
    %c4_102 = arith.constant 4 : index
    %c0_103 = arith.constant 0 : index
    %244 = vector.load %arg3[%c4_102, %c0_103] : memref<5x128xf32, #tpu.memory_space<vmem>>, vector<1x128xf32>
    %245 = vector.broadcast %244 : vector<1x128xf32> to vector<32x128xf32>
    %246 = arith.addf %243, %245 : vector<32x128xf32>
    %cst_104 = arith.constant 0.000000e+00 : f32
    %247 = vector.broadcast %cst_104 : f32 to vector<32x128xf32>
    %248 = arith.cmpf oge, %246, %247 : vector<32x128xf32>
    %249 = vector.broadcast %0 : f32 to vector<32x128xf32>
    %250 = arith.mulf %246, %249 : vector<32x128xf32>
    %251 = arith.select %248, %246, %250 : vector<32x128xi1>, vector<32x128xf32>
    %cst_105 = arith.constant dense<0.000000e+00> : vector<128xf32>
    %252 = vector.multi_reduction <add>, %251, %cst_105 [0] : vector<32x128xf32> to vector<128xf32>
    %253 = vector.shape_cast %252 : vector<128xf32> to vector<1x128xf32>
    %254 = arith.mulf %251, %251 : vector<32x128xf32>
    %cst_106 = arith.constant dense<0.000000e+00> : vector<128xf32>
    %255 = vector.multi_reduction <add>, %254, %cst_106 [0] : vector<32x128xf32> to vector<128xf32>
    %256 = vector.shape_cast %255 : vector<128xf32> to vector<1x128xf32>
    %257 = tpu.concatenate %253, %256 in 0 : vector<1x128xf32>, vector<1x128xf32> -> vector<2x128xf32>
    %c8_i32_107 = arith.constant 8 : i32
    %258 = tpu.dynamic_rotate %257 by %c8_i32_107 dim 1 : vector<2x128xf32>, i32 -> vector<2x128xf32>
    %259 = arith.addf %257, %258 : vector<2x128xf32>
    %c16_i32_108 = arith.constant 16 : i32
    %260 = tpu.dynamic_rotate %259 by %c16_i32_108 dim 1 : vector<2x128xf32>, i32 -> vector<2x128xf32>
    %261 = arith.addf %259, %260 : vector<2x128xf32>
    %c32_i32_109 = arith.constant 32 : i32
    %262 = tpu.dynamic_rotate %261 by %c32_i32_109 dim 1 : vector<2x128xf32>, i32 -> vector<2x128xf32>
    %263 = arith.addf %261, %262 : vector<2x128xf32>
    %c64_i32_110 = arith.constant 64 : i32
    %264 = tpu.dynamic_rotate %263 by %c64_i32_110 dim 1 : vector<2x128xf32>, i32 -> vector<2x128xf32>
    %265 = arith.addf %263, %264 : vector<2x128xf32>
    %266 = vector.extract_strided_slice %265 {offsets = [0, 0], sizes = [1, 128], strides = [1, 1]} : vector<2x128xf32> to vector<1x128xf32>
    %cst_111 = arith.constant 0.001953125 : f32
    %267 = vector.broadcast %cst_111 : f32 to vector<1x128xf32>
    %268 = arith.mulf %266, %267 : vector<1x128xf32>
    %269 = vector.extract_strided_slice %265 {offsets = [1, 0], sizes = [1, 128], strides = [1, 1]} : vector<2x128xf32> to vector<1x128xf32>
    %cst_112 = arith.constant 0.001953125 : f32
    %270 = vector.broadcast %cst_112 : f32 to vector<1x128xf32>
    %271 = arith.mulf %269, %270 : vector<1x128xf32>
    %272 = arith.mulf %268, %268 : vector<1x128xf32>
    %273 = arith.subf %271, %272 : vector<1x128xf32>
    %c4_113 = arith.constant 4 : index
    %c0_114 = arith.constant 0 : index
    %274 = vector.load %arg4[%c4_113, %c0_114] : memref<5x128xf32, #tpu.memory_space<vmem>>, vector<1x128xf32>
    %cst_115 = arith.constant 9.99999974E-6 : f32
    %275 = vector.broadcast %cst_115 : f32 to vector<1x128xf32>
    %276 = arith.addf %273, %275 : vector<1x128xf32>
    %277 = math.rsqrt %276 : vector<1x128xf32>
    %278 = arith.mulf %274, %277 : vector<1x128xf32>
    %c4_116 = arith.constant 4 : index
    %c0_117 = arith.constant 0 : index
    %279 = vector.load %arg5[%c4_116, %c0_117] : memref<5x128xf32, #tpu.memory_space<vmem>>, vector<1x128xf32>
    %280 = arith.mulf %268, %278 : vector<1x128xf32>
    %281 = arith.subf %279, %280 : vector<1x128xf32>
    %282 = vector.broadcast %278 : vector<1x128xf32> to vector<32x128xf32>
    %283 = arith.mulf %251, %282 : vector<32x128xf32>
    %284 = vector.broadcast %281 : vector<1x128xf32> to vector<32x128xf32>
    %285 = arith.addf %283, %284 : vector<32x128xf32>
    %286 = arith.addf %233, %285 : vector<32x128xf32>
    %c0_118 = arith.constant 0 : index
    %c0_119 = arith.constant 0 : index
    %287 = vector.load %arg6[%c0_118, %c0_119] : memref<32x128xf32, #tpu.memory_space<vmem>>, vector<32x128xf32>
    tpu.vector_store %arg6[%c0_118, %c0_119], %286 {strides = array<i32>} : memref<32x128xf32, #tpu.memory_space<vmem>>, vector<32x128xf32>,
    return
  }
}

</mosaic_0001>

<llo_original>
// kernel: resblock_pallas_packed.1
$region0: #{resblock_pallas_packed.1}
  #allocation0 [shape = 'u32[]', space=smem, size = 0x4, offset = 0x4, fixed_abs, tag = 'smem constant byte address 0x4 - core index']
  #allocation1 [shape = 'u32[144,128]{1,0:T(1,128)}', space=vmem, size = 0x12000, scoped, tag = 'internal scratch']
  #allocation2 [shape = 'f32[1,1]{1,0:T(1,128)S(6)}', space=smem, size = 0x200, scoped, tag = 'scoped memory for resblock_pallas_packed.1']
  %s0 = inlined_call_operand.<no memory space> [shape: f32[1,1], index: 0, kind: input, shape index: {}]
  %s1 = inlined_call_operand.hbm [shape: f32[32,128], index: 1, kind: input, shape index: {}]
  %s2 = inlined_call_operand.hbm [shape: f32[5,384,128], index: 2, kind: input, shape index: {}]
  %s3 = inlined_call_operand.hbm [shape: f32[5,128], index: 3, kind: input, shape index: {}]
  %s4 = inlined_call_operand.hbm [shape: f32[5,128], index: 4, kind: input, shape index: {}]
  %s5 = inlined_call_operand.vmem [shape: f32[5,128], index: 5, kind: input, shape index: {}]
  %s6 = inlined_call_operand.hbm [shape: f32[32,128], index: 6, kind: output, shape index: {}]
  %s7 = sld [smem:[#allocation0]]
  $region50: #{resblock_pallas_packed.1} parent=0
    _
  %s9 = ssub.s32 1, %s7
  %s10 = scalar_select 0, %s9, %s7
  %11 = sst [smem:[#allocation2]] %s0
  $region1: #{resblock_pallas_packed.1} parent=0
    #allocation3 [shape = 'u8[16384]{0}', space=vmem, size = 0x4000, scoped, tag = 'input window, operand 1, single buffered']
    #allocation4 [shape = 's32[1]{0}', space=sflag, size = 0x4, scoped, tag = 'scoped memory for resblock_pallas_packed.1']
    #allocation5 [shape = 's32[1]{0}', space=sflag, size = 0x4, scoped, tag = 'scoped memory for resblock_pallas_packed.1']
    #allocation6 [shape = 'u8[983040]{0}', space=vmem, size = 0xf0000, scoped, tag = 'input window, operand 2, single buffered']
    #allocation7 [shape = 's32[1]{0}', space=sflag, size = 0x4, scoped, tag = 'scoped memory for resblock_pallas_packed.1']
    #allocation8 [shape = 'u8[4096]{0}', space=vmem, size = 0x1000, scoped, tag = 'input window, operand 3, single buffered']
    #allocation9 [shape = 'u8[4096]{0}', space=vmem, size = 0x1000, scoped, tag = 'input window, operand 4, single buffered']
    #allocation10 [shape = 's32[1]{0}', space=sflag, size = 0x4, scoped, tag = 'scoped memory for resblock_pallas_packed.1']
    #allocation11 [shape = 'u8[16384]{0}', space=vmem, size = 0x4000, scoped, tag = 'output window, operand 0, single buffered']
    %12 = vsyncpa [#allocation4], 0
    %13 = vsyncpa [#allocation7], 0
    %14 = vsyncpa [#allocation10], 0
    %15 = vsyncpa [#allocation5], 0
    // Predicated region
    $region2: #{resblock_pallas_packed.1} parent=1 // pred_check
      _
    $region3: #{resblock_pallas_packed.1} parent=1 // pred_check_branch
      %17 = sbr.rel (0) target = $region5
    $region4: #{resblock_pallas_packed.1} parent=1 // pred_region
      _
    $region5: #{resblock_pallas_packed.1} parent=1 // pred_fallthru
      _
    // Predicated region
    $region6: #{resblock_pallas_packed.1} parent=1 // pred_check
      _
    $region7: #{resblock_pallas_packed.1} parent=1 // pred_check_branch
      %19 = sbr.rel (0) target = $region9
    $region8: #{resblock_pallas_packed.1} parent=1 // pred_region
      %s21 = ssub.s32 512, 512
      %22 = vsyncadd [#allocation4], %s21
      %s23 = sshll.u32 [#allocation3], 4
      %s24 = int_to_ptr.vmem [resolvable:$true] %s23
      %29 = dma.hbm_to_vmem [thread:$0]  %s1, 512, %s24, [#allocation4], 128, 128, 8
    $region9: #{resblock_pallas_packed.1} parent=1 // pred_fallthru
      _
    // Predicated region
    $region10: #{resblock_pallas_packed.1} parent=1 // pred_check
      _
    $region11: #{resblock_pallas_packed.1} parent=1 // pred_check_branch
      %31 = sbr.rel (0) target = $region13
    $region12: #{resblock_pallas_packed.1} parent=1 // pred_region
      %s33 = ssub.s32 30720, 30720
      %34 = vsyncadd [#allocation7], %s33
      %s35 = sshll.u32 [#allocation6], 4
      %s36 = int_to_ptr.vmem [resolvable:$true] %s35
      %41 = dma.hbm_to_vmem [thread:$0]  %s2, 30720, %s36, [#allocation7], 128, 128, 8
    $region13: #{resblock_pallas_packed.1} parent=1 // pred_fallthru
      _
    // Predicated region
    $region14: #{resblock_pallas_packed.1} parent=1 // pred_check
      _
    $region15: #{resblock_pallas_packed.1} parent=1 // pred_check_branch
      %43 = sbr.rel (0) target = $region17
    $region16: #{resblock_pallas_packed.1} parent=1 // pred_region
      %s45 = ssub.s32 128, 128
      %46 = vsyncadd [#allocation7], %s45
      %s48 = sshll.u32 [#allocation8], 4
      %s49 = int_to_ptr.vmem [resolvable:$true] %s48
      %51 = dma.hbm_to_vmem [thread:$0]  %s3, 128, %s49, [#allocation7]
    $region17: #{resblock_pallas_packed.1} parent=1 // pred_fallthru
      _
    // Predicated region
    $region18: #{resblock_pallas_packed.1} parent=1 // pred_check
      _
    $region19: #{resblock_pallas_packed.1} parent=1 // pred_check_branch
      %53 = sbr.rel (0) target = $region21
    $region20: #{resblock_pallas_packed.1} parent=1 // pred_region
      %s55 = ssub.s32 128, 128
      %56 = vsyncadd [#allocation10], %s55
      %s58 = sshll.u32 [#allocation9], 4
      %s59 = int_to_ptr.vmem [resolvable:$true] %s58
      %61 = dma.hbm_to_vmem [thread:$0]  %s4, 128, %s59, [#allocation10]
    $region21: #{resblock_pallas_packed.1} parent=1 // pred_fallthru
      _
    // Predicated region
    $region22: #{resblock_pallas_packed.1} parent=1 // pred_check
      _
    $region23: #{resblock_pallas_packed.1} parent=1 // pred_check_branch
      %63 = sbr.rel (0) target = $region25
    $region24: #{resblock_pallas_packed.1} parent=1 // pred_region
      _
    $region25: #{resblock_pallas_packed.1} parent=1 // pred_fallthru
      _
    // Predicated region
    $region26: #{resblock_pallas_packed.1} parent=1 // pred_check
      _
    $region27: #{resblock_pallas_packed.1} parent=1 // pred_check_branch
      %65 = sbr.rel (0) target = $region29
    $region28: #{resblock_pallas_packed.1} parent=1 // pred_region
      %66 = dma.done [#allocation4], 512
    $region29: #{resblock_pallas_packed.1} parent=1 // pred_fallthru
      _
    // Predicated region
    $region30: #{resblock_pallas_packed.1} parent=1 // pred_check
      _
    $region31: #{resblock_pallas_packed.1} parent=1 // pred_check_branch
      %68 = sbr.rel (0) target = $region33
    $region32: #{resblock_pallas_packed.1} parent=1 // pred_region
      %69 = dma.done [#allocation7], 30720
    $region33: #{resblock_pallas_packed.1} parent=1 // pred_fallthru
      _
    // Predicated region
    $region34: #{resblock_pallas_packed.1} parent=1 // pred_check
      _
    $region35: #{resblock_pallas_packed.1} parent=1 // pred_check_branch
      %71 = sbr.rel (0) target = $region37
    $region36: #{resblock_pallas_packed.1} parent=1 // pred_region
      %72 = dma.done [#allocation7], 128
    $region37: #{resblock_pallas_packed.1} parent=1 // pred_fallthru
      _
    // Predicated region
    $region38: #{resblock_pallas_packed.1} parent=1 // pred_check
      _
    $region39: #{resblock_pallas_packed.1} parent=1 // pred_check_branch
      %74 = sbr.rel (0) target = $region41
    $region40: #{resblock_pallas_packed.1} parent=1 // pred_region
      %75 = dma.done [#allocation10], 128
    $region41: #{resblock_pallas_packed.1} parent=1 // pred_fallthru
      _
    %s76 = sld [smem:[#allocation2]]
    %v77 = vlaneseq
    %v78 = vshrl.u32 %v77, 7
    %v79 = vadd.s32 %v78, 8
    %v80 = vadd.s32 %v78, 16
    %v81 = vadd.s32 %v78, 24
    %vm82 = vcmp.lt.s32.totalorder %v78, 0
    %v83 = vsub.s32 0, %v78
    %v84 = vsel %vm82, %v83, %v78
    %v85 = vshrl.u32 %v84, 4
    %v86 = vand.u32 %v84, 15
    %v87 = vsub.s32 0, %v86
    %v88 = vsel %vm82, %v87, %v86
    %vm89 = vcmp.lt.s32.totalorder %v79, 0
    %v90 = vsub.s32 0, %v79
    %v91 = vsel %vm89, %v90, %v79
    %v92 = vshrl.u32 %v91, 4
    %v93 = vand.u32 %v91, 15
    %v94 = vsub.s32 0, %v93
    %v95 = vsel %vm89, %v94, %v93
    %vm96 = vcmp.lt.s32.totalorder %v80, 0
    %v97 = vsub.s32 0, %v80
    %v98 = vsel %vm96, %v97, %v80
    %v99 = vshrl.u32 %v98, 4
    %v100 = vand.u32 %v98, 15
    %v101 = vsub.s32 0, %v100
    %v102 = vsel %vm96, %v101, %v100
    %vm103 = vcmp.lt.s32.totalorder %v81, 0
    %v104 = vsub.s32 0, %v81
    %v105 = vsel %vm103, %v104, %v81
    %v106 = vshrl.u32 %v105, 4
    %v107 = vand.u32 %v105, 15
    %v108 = vsub.s32 0, %v107
    %v109 = vsel %vm103, %v108, %v107
    %vm110 = vcmp.ne.s32.totalorder %v88, 0
    %vm111 = vcmp.ne.s32.totalorder %v95, 0
    %vm112 = vcmp.ne.s32.totalorder %v102, 0
    %vm113 = vcmp.ne.s32.totalorder %v109, 0
    %vm114 = vcmp.lt.s32.totalorder %v88, 0
    %vm115 = vcmp.lt.s32.totalorder %v95, 0
    %vm116 = vcmp.lt.s32.totalorder %v102, 0
    %vm117 = vcmp.lt.s32.totalorder %v109, 0
    %vm118 = vmand %vm114, %vm110
    %vm119 = vmand %vm115, %vm111
    %vm120 = vmand %vm116, %vm112
    %vm121 = vmand %vm117, %vm113
    %v122 = vadd.s32 %v88, 16
    %v123 = vadd.s32 %v95, 16
    %v124 = vadd.s32 %v102, 16
    %v125 = vadd.s32 %v109, 16
    %v126 = vsel %vm118, %v122, %v88
    %v127 = vsel %vm119, %v123, %v95
    %v128 = vsel %vm120, %v124, %v102
    %v129 = vsel %vm121, %v125, %v109
    %vm130 = vcmp.gt.s32.totalorder %v126, 0
    %vm131 = vcmp.gt.s32.totalorder %v127, 0
    %vm132 = vcmp.gt.s32.totalorder %v128, 0
    %vm133 = vcmp.gt.s32.totalorder %v129, 0
    %vm134 = vcmp.lt.s32.totalorder %v126, 15
    %vm135 = vcmp.lt.s32.totalorder %v127, 15
    %vm136 = vcmp.lt.s32.totalorder %v128, 15
    %vm137 = vcmp.lt.s32.totalorder %v129, 15
    %v138 = vld [vmem:[#allocation3] sm:$0xff]
    %v139 = vld [vmem:[#allocation3 + $0x8] sm:$0xff]
    %v140 = vld [vmem:[#allocation3 + $0x10] sm:$0xff]
    %v141 = vld [vmem:[#allocation3 + $0x18] sm:$0xff]
    %v142 = vrot.slane %v138, 7
    %v143 = vrot.slane %v139, 7
    %v144 = vrot.slane %v140, 7
    %v145 = vrot.slane %v141, 7
    %vm146 = vcmp.lt.s32.totalorder %v78, 1
    %v147 = vsel %vm146, %v144, %v145
    %v148 = vsel %vm146, %v143, %v144
    %v149 = vsel %vm146, %v142, %v143
    %v150 = vsel %vm146, %v145, %v142
    %v151 = vsel %vm130, %v150, 0.0
    %v152 = vsel %vm131, %v149, 0.0
    %v153 = vsel %vm132, %v148, 0.0
    %v154 = vsel %vm133, %v147, 0.0
    %v155 = vrot.slane %v138, 1
    %v156 = vrot.slane %v139, 1
    %v157 = vrot.slane %v140, 1
    %v158 = vrot.slane %v141, 1
    %vm159 = vcmp.lt.s32.totalorder %v78, 7
    %v160 = vsel %vm159, %v157, %v158
    %v161 = vsel %vm159, %v156, %v157
    %v162 = vsel %vm159, %v155, %v156
    %v163 = vsel %vm159, %v158, %v155
    %v164 = vsel %vm134, %v162, 0.0
    %v165 = vsel %vm135, %v161, 0.0
    %v166 = vsel %vm136, %v160, 0.0
    %v167 = vsel %vm137, %v163, 0.0
    %v168 = vld [vmem:[#allocation6] sm:$0xff]
    %v169 = vld [vmem:[#allocation6 + $0x8] sm:$0xff]
    %v170 = vld [vmem:[#allocation6 + $0x10] sm:$0xff]
    %v171 = vld [vmem:[#allocation6 + $0x18] sm:$0xff]
    %v172 = vld [vmem:[#allocation6 + $0x20] sm:$0xff]
    %v173 = vld [vmem:[#allocation6 + $0x28] sm:$0xff]
    %v174 = vld [vmem:[#allocation6 + $0x30] sm:$0xff]
    %v175 = vld [vmem:[#allocation6 + $0x38] sm:$0xff]
    %v176 = vld [vmem:[#allocation6 + $0x40] sm:$0xff]
    %v177 = vld [vmem:[#allocation6 + $0x48] sm:$0xff]
    %v178 = vld [vmem:[#allocation6 + $0x50] sm:$0xff]
    %v179 = vld [vmem:[#allocation6 + $0x58] sm:$0xff]
    %v180 = vld [vmem:[#allocation6 + $0x60] sm:$0xff]
    %v181 = vld [vmem:[#allocation6 + $0x68] sm:$0xff]
    %v182 = vld [vmem:[#allocation6 + $0x70] sm:$0xff]
    %v183 = vld [vmem:[#allocation6 + $0x78] sm:$0xff]
    %v184 = vld [vmem:[#allocation6 + $0x80] sm:$0xff]
    %v185 = vld [vmem:[#allocation6 + $0x88] sm:$0xff]
    %v186 = vld [vmem:[#allocation6 + $0x90] sm:$0xff]
    %v187 = vld [vmem:[#allocation6 + $0x98] sm:$0xff]
    %v188 = vld [vmem:[#allocation6 + $0xa0] sm:$0xff]
    %v189 = vld [vmem:[#allocation6 + $0xa8] sm:$0xff]
    %v190 = vld [vmem:[#allocation6 + $0xb0] sm:$0xff]
    %v191 = vld [vmem:[#allocation6 + $0xb8] sm:$0xff]
    %v192 = vld [vmem:[#allocation6 + $0xc0] sm:$0xff]
    %v193 = vld [vmem:[#allocation6 + $0xc8] sm:$0xff]
    %v194 = vld [vmem:[#allocation6 + $0xd0] sm:$0xff]
    %v195 = vld [vmem:[#allocation6 + $0xd8] sm:$0xff]
    %v196 = vld [vmem:[#allocation6 + $0xe0] sm:$0xff]
    %v197 = vld [vmem:[#allocation6 + $0xe8] sm:$0xff]
    %v198 = vld [vmem:[#allocation6 + $0xf0] sm:$0xff]
    %v199 = vld [vmem:[#allocation6 + $0xf8] sm:$0xff]
    %v200 = vld [vmem:[#allocation6 + $0x100] sm:$0xff]
    %v201 = vld [vmem:[#allocation6 + $0x108] sm:$0xff]
    %v202 = vld [vmem:[#allocation6 + $0x110] sm:$0xff]
    %v203 = vld [vmem:[#allocation6 + $0x118] sm:$0xff]
    %v204 = vld [vmem:[#allocation6 + $0x120] sm:$0xff]
    %v205 = vld [vmem:[#allocation6 + $0x128] sm:$0xff]
    %v206 = vld [vmem:[#allocation6 + $0x130] sm:$0xff]
    %v207 = vld [vmem:[#allocation6 + $0x138] sm:$0xff]
    %v208 = vld [vmem:[#allocation6 + $0x140] sm:$0xff]
    %v209 = vld [vmem:[#allocation6 + $0x148] sm:$0xff]
    %v210 = vld [vmem:[#allocation6 + $0x150] sm:$0xff]
    %v211 = vld [vmem:[#allocation6 + $0x158] sm:$0xff]
    %v212 = vld [vmem:[#allocation6 + $0x160] sm:$0xff]
    %v213 = vld [vmem:[#allocation6 + $0x168] sm:$0xff]
    %v214 = vld [vmem:[#allocation6 + $0x170] sm:$0xff]
    %v215 = vld [vmem:[#allocation6 + $0x178] sm:$0xff]
    %v216 = vld [vmem:[#allocation8] sm:$0x1]
    %v217 = vlaneseq
    %v218 = vshrl.u32 %v217, 7
    %v219 = vsub.s32 0, %v218
    %v220 = vrot.slane %v216, %v219
    %221 = vmatprep.subr.mxu0 0.0
    %222 = vmatpush1.msra.mxu0 %v183
    %223 = vmatprep.subr.mxu0 0.0
    %224 = vmatpush1.msra.mxu0 %v182
    %225 = vmatprep.subr.mxu0 0.0
    %226 = vmatpush1.msra.mxu0 %v181
    %227 = vmatprep.subr.mxu0 0.0
    %228 = vmatpush1.msra.mxu0 %v180
    %229 = vmatprep.subr.mxu0 0.0
    %230 = vmatpush1.msra.mxu0 %v179
    %231 = vmatprep.subr.mxu0 0.0
    %232 = vmatpush1.msra.mxu0 %v178
    %233 = vmatprep.subr.mxu0 0.0
    %234 = vmatpush1.msra.mxu0 %v177
    %235 = vmatprep.subr.mxu0 0.0
    %236 = vmatpush1.msra.mxu0 %v176
    %237 = vmatprep.subr.mxu0 0.0
    %238 = vmatpush1.msra.mxu0 %v175
    %239 = vmatprep.subr.mxu0 0.0
    %240 = vmatpush1.msra.mxu0 %v174
    %241 = vmatprep.subr.mxu0 0.0
    %242 = vmatpush1.msra.mxu0 %v173
    %243 = vmatprep.subr.mxu0 0.0
    %244 = vmatpush1.msra.mxu0 %v172
    %245 = vmatprep.subr.mxu0 0.0
    %246 = vmatpush1.msra.mxu0 %v171
    %247 = vmatprep.subr.mxu0 0.0
    %248 = vmatpush1.msra.mxu0 %v170
    %249 = vmatprep.subr.mxu0 0.0
    %250 = vmatpush1.msra.mxu0 %v169
    %251 = vmatprep.subr.mxu0 0.0
    %252 = vmatpush1.msra.mxu0 %v168
    %253 = vmatprep.subr.mxu0 0.0
    %254 = vmatpush2.msra.mxu0 %v199
    %255 = vmatprep.subr.mxu0 0.0
    %256 = vmatpush2.msra.mxu0 %v198
    %257 = vmatprep.subr.mxu0 0.0
    %258 = vmatpush2.msra.mxu0 %v197
    %259 = vmatprep.subr.mxu0 0.0
    %260 = vmatpush2.msra.mxu0 %v196
    %261 = vmatprep.subr.mxu0 0.0
    %262 = vmatpush2.msra.mxu0 %v195
    %263 = vmatprep.subr.mxu0 0.0
    %264 = vmatpush2.msra.mxu0 %v194
    %265 = vmatprep.subr.mxu0 0.0
    %266 = vmatpush2.msra.mxu0 %v193
    %267 = vmatprep.subr.mxu0 0.0
    %268 = vmatpush2.msra.mxu0 %v192
    %269 = vmatprep.subr.mxu0 0.0
    %270 = vmatpush2.msra.mxu0 %v191
    %271 = vmatprep.subr.mxu0 0.0
    %272 = vmatpush2.msra.mxu0 %v190
    %273 = vmatprep.subr.mxu0 0.0
    %274 = vmatpush2.msra.mxu0 %v189
    %275 = vmatprep.subr.mxu0 0.0
    %276 = vmatpush2.msra.mxu0 %v188
    %277 = vmatprep.subr.mxu0 0.0
    %278 = vmatpush2.msra.mxu0 %v187
    %279 = vmatprep.subr.mxu0 0.0
    %280 = vmatpush2.msra.mxu0 %v186
    %281 = vmatprep.subr.mxu0 0.0
    %282 = vmatpush2.msra.mxu0 %v185
    %283 = vmatprep.subr.mxu0 0.0
    %284 = vmatpush2.msra.mxu0 %v184
    %285 = vmatprep.mubr.f32.mxu0 %v138
    %286 = vmatmul.mubr.f32.gmra.mxu0 %v151
    %v287 = vpop.f32.mrf.mxu0
    %v288 = vadd.f32 %v220, %v287
    %v289 = vpop.f32.mrf.mxu0
    %290 = vmatprep.mubr.f32.mxu0 %v139
    %291 = vmatmul.mubr.f32.gmra.mxu0 %v152
    %v292 = vpop.f32.mrf.mxu0
    %v293 = vadd.f32 %v220, %v292
    %v294 = vpop.f32.mrf.mxu0
    %295 = vmatprep.mubr.f32.mxu0 %v140
    %296 = vmatmul.mubr.f32.gmra.mxu0 %v153
    %v297 = vpop.f32.mrf.mxu0
    %v298 = vadd.f32 %v220, %v297
    %v299 = vpop.f32.mrf.mxu0
    %300 = vmatprep.mubr.f32.mxu0 %v141
    %301 = vmatmul.mubr.f32.gmra.mxu0 %v154
    %v302 = vpop.f32.mrf.mxu0
    %v303 = vadd.f32 %v220, %v302
    %v304 = vpop.f32.mrf.mxu0
    %305 = vdwg.mxu0
    %306 = vmatprep.subr.mxu0 0.0
    %307 = vmatpush1.msra.mxu0 %v215
    %308 = vmatprep.subr.mxu0 0.0
    %309 = vmatpush1.msra.mxu0 %v214
    %310 = vmatprep.subr.mxu0 0.0
    %311 = vmatpush1.msra.mxu0 %v213
    %312 = vmatprep.subr.mxu0 0.0
    %313 = vmatpush1.msra.mxu0 %v212
    %314 = vmatprep.subr.mxu0 0.0
    %315 = vmatpush1.msra.mxu0 %v211
    %316 = vmatprep.subr.mxu0 0.0
    %317 = vmatpush1.msra.mxu0 %v210
    %318 = vmatprep.subr.mxu0 0.0
    %319 = vmatpush1.msra.mxu0 %v209
    %320 = vmatprep.subr.mxu0 0.0
    %321 = vmatpush1.msra.mxu0 %v208
    %322 = vmatprep.subr.mxu0 0.0
    %323 = vmatpush1.msra.mxu0 %v207
    %324 = vmatprep.subr.mxu0 0.0
    %325 = vmatpush1.msra.mxu0 %v206
    %326 = vmatprep.subr.mxu0 0.0
    %327 = vmatpush1.msra.mxu0 %v205
    %328 = vmatprep.subr.mxu0 0.0
    %329 = vmatpush1.msra.mxu0 %v204
    %330 = vmatprep.subr.mxu0 0.0
    %331 = vmatpush1.msra.mxu0 %v203
    %332 = vmatprep.subr.mxu0 0.0
    %333 = vmatpush1.msra.mxu0 %v202
    %334 = vmatprep.subr.mxu0 0.0
    %335 = vmatpush1.msra.mxu0 %v201
    %336 = vmatprep.subr.mxu0 0.0
    %337 = vmatpush1.msra.mxu0 %v200
    %338 = vmatprep.subr.mxu0 0.0
    %339 = vmatpush2.msra.mxu0 0.0
    %340 = vmatprep.subr.mxu0 0.0
    %341 = vmatpush2.msra.mxu0 0.0
    %342 = vmatprep.subr.mxu0 0.0
    %343 = vmatpush2.msra.mxu0 0.0
    %344 = vmatprep.subr.mxu0 0.0
    %345 = vmatpush2.msra.mxu0 0.0
    %346 = vmatprep.subr.mxu0 0.0
    %347 = vmatpush2.msra.mxu0 0.0
    %348 = vmatprep.subr.mxu0 0.0
    %349 = vmatpush2.msra.mxu0 0.0
    %350 = vmatprep.subr.mxu0 0.0
    %351 = vmatpush2.msra.mxu0 0.0
    %352 = vmatprep.subr.mxu0 0.0
    %353 = vmatpush2.msra.mxu0 0.0
    %354 = vmatprep.subr.mxu0 0.0
    %355 = vmatpush2.msra.mxu0 0.0
    %356 = vmatprep.subr.mxu0 0.0
    %357 = vmatpush2.msra.mxu0 0.0
    %358 = vmatprep.subr.mxu0 0.0
    %359 = vmatpush2.msra.mxu0 0.0
    %360 = vmatprep.subr.mxu0 0.0
    %361 = vmatpush2.msra.mxu0 0.0
    %362 = vmatprep.subr.mxu0 0.0
    %363 = vmatpush2.msra.mxu0 0.0
    %364 = vmatprep.subr.mxu0 0.0
    %365 = vmatpush2.msra.mxu0 0.0
    %366 = vmatprep.subr.mxu0 0.0
    %367 = vmatpush2.msra.mxu0 0.0
    %368 = vmatprep.subr.mxu0 0.0
    %369 = vmatpush2.msra.mxu0 0.0
    %370 = vmatprep.mubr.f32.mxu0 0.0
    %371 = vmatmul.mubr.f32.gmra.mxu0 %v164
    %v372 = vpop.f32.mrf.mxu0
    %v373 = vadd.f32 %v288, %v372
    %v374 = vpop.f32.mrf.mxu0
    %375 = vmatprep.mubr.f32.mxu0 0.0
    %376 = vmatmul.mubr.f32.gmra.mxu0 %v165
    %v377 = vpop.f32.mrf.mxu0
    %v378 = vadd.f32 %v293, %v377
    %v379 = vpop.f32.mrf.mxu0
    %380 = vmatprep.mubr.f32.mxu0 0.0
    %381 = vmatmul.mubr.f32.gmra.mxu0 %v166
    %v382 = vpop.f32.mrf.mxu0
    %v383 = vadd.f32 %v298, %v382
    %v384 = vpop.f32.mrf.mxu0
    %385 = vmatprep.mubr.f32.mxu0 0.0
    %386 = vmatmul.mubr.f32.gmra.mxu0 %v167
    %v387 = vpop.f32.mrf.mxu0
    %v388 = vadd.f32 %v303, %v387
    %v389 = vpop.f32.mrf.mxu0
    %390 = vdwg.mxu0
    %vm391 = vcmp.ge.f32.partialorder %v373, 0.0
    %vm392 = vcmp.ge.f32.partialorder %v378, 0.0
    %vm393 = vcmp.ge.f32.partialorder %v383, 0.0
    %vm394 = vcmp.ge.f32.partialorder %v388, 0.0
    %v395 = vstv %s76
    %v396 = vmul.f32 %v373, %v395
    %v397 = vmul.f32 %v378, %v395
    %v398 = vmul.f32 %v383, %v395
    %v399 = vmul.f32 %v388, %v395
    %v400 = vsel %vm391, %v373, %v396
    %v401 = vsel %vm392, %v378, %v397
    %v402 = vsel %vm393, %v383, %v398
    %v403 = vsel %vm394, %v388, %v399
    %v404 = vadd.f32 %v400, %v401
    %v405 = vadd.f32 %v404, %v402
    %v406 = vadd.f32 %v405, %v403
    %v407 = vrot.slane %v406, 4
    %v408 = vadd.f32 %v406, %v407
    %v409 = vrot.slane %v408, 2
    %v410 = vadd.f32 %v408, %v409
    %v411 = vrot.slane %v410, 1
    %v412 = vadd.f32 %v410, %v411
    %v413 = vmul.f32 %v400, %v400
    %v414 = vmul.f32 %v401, %v401
    %v415 = vmul.f32 %v402, %v402
    %v416 = vmul.f32 %v403, %v403
    %v417 = vadd.f32 %v413, %v414
    %v418 = vadd.f32 %v417, %v415
    %v419 = vadd.f32 %v418, %v416
    %v420 = vrot.slane %v419, 4
    %v421 = vadd.f32 %v419, %v420
    %v422 = vrot.slane %v421, 2
    %v423 = vadd.f32 %v421, %v422
    %v424 = vrot.slane %v423, 1
    %v425 = vadd.f32 %v423, %v424
    %vm426 = vcmask 1040384
    %v427 = vsel %vm426, %v412, %v425
    %428 = vrot.lane.b32.xlu0 %v427, 8
    %v429 = vpop.permute.xlu0 %428
    %v430 = vadd.f32 %v427, %v429
    %431 = vrot.lane.b32.xlu0 %v430, 16
    %v432 = vpop.permute.xlu0 %431
    %v433 = vadd.f32 %v430, %v432
    %434 = vrot.lane.b32.xlu0 %v433, 32
    %v435 = vpop.permute.xlu0 %434
    %v436 = vadd.f32 %v433, %v435
    %437 = vrot.lane.b32.xlu0 %v436, 64
    %v438 = vpop.permute.xlu0 %437
    %v439 = vadd.f32 %v436, %v438
    %v440 = vmul.f32 %v439, 0.001953125
    %v441 = vmul.f32 %v440, %v440
    %v443 = vrot.slane %v441, 7
    %v445 = vsub.f32 %v440, %v443
    %v446 = vld [vmem:[#allocation9] sm:$0x1]
    %v447 = vadd.f32 %v445, 1e-05
    %v448 = vrsqrt.pop %v447
    %v450 = vrot.slane %v448, 1
    %v452 = vmul.f32 %v446, %v450
    %v453 = vld [vmem:[%s5] sm:$0x1]
    %v454 = vmul.f32 %v440, %v452
    %v455 = vsub.f32 %v453, %v454
    %v456 = vlaneseq
    %v457 = vshrl.u32 %v456, 7
    %v458 = vsub.s32 0, %v457
    %v459 = vrot.slane %v452, %v458
    %v460 = vmul.f32 %v400, %v459
    %v461 = vmul.f32 %v401, %v459
    %v462 = vmul.f32 %v402, %v459
    %v463 = vmul.f32 %v403, %v459
    %v464 = vlaneseq
    %v465 = vshrl.u32 %v464, 7
    %v466 = vsub.s32 0, %v465
    %v467 = vrot.slane %v455, %v466
    %v468 = vadd.f32 %v460, %v467
    %v469 = vadd.f32 %v461, %v467
    %v470 = vadd.f32 %v462, %v467
    %v471 = vadd.f32 %v463, %v467
    %v472 = vrot.slane %v468, 7
    %v473 = vrot.slane %v469, 7
    %v474 = vrot.slane %v470, 7
    %v475 = vrot.slane %v471, 7
    %v476 = vsel %vm146, %v474, %v475
    %v477 = vsel %vm146, %v473, %v474
    %v478 = vsel %vm146, %v472, %v473
    %v479 = vsel %vm146, %v475, %v472
    %v480 = vsel %vm130, %v479, 0.0
    %v481 = vsel %vm131, %v478, 0.0
    %v482 = vsel %vm132, %v477, 0.0
    %v483 = vsel %vm133, %v476, 0.0
    %v484 = vrot.slane %v468, 1
    %v485 = vrot.slane %v469, 1
    %v486 = vrot.slane %v470, 1
    %v487 = vrot.slane %v471, 1
    %v488 = vsel %vm159, %v486, %v487
    %v489 = vsel %vm159, %v485, %v486
    %v490 = vsel %vm159, %v484, %v485
    %v491 = vsel %vm159, %v487, %v484
    %v492 = vsel %vm134, %v490, 0.0
    %v493 = vsel %vm135, %v489, 0.0
    %v494 = vsel %vm136, %v488, 0.0
    %v495 = vsel %vm137, %v491, 0.0
    %s496 = scalar_lea.vmem [#allocation6], 384
    %v497 = vld [vmem:[%s496] sm:$0xff]
    %v498 = vld [vmem:[%s496 + $0x8] sm:$0xff]
    %v499 = vld [vmem:[%s496 + $0x10] sm:$0xff]
    %v500 = vld [vmem:[%s496 + $0x18] sm:$0xff]
    %v501 = vld [vmem:[%s496 + $0x20] sm:$0xff]
    %v502 = vld [vmem:[%s496 + $0x28] sm:$0xff]
    %v503 = vld [vmem:[%s496 + $0x30] sm:$0xff]
    %v504 = vld [vmem:[%s496 + $0x38] sm:$0xff]
    %v505 = vld [vmem:[%s496 + $0x40] sm:$0xff]
    %v506 = vld [vmem:[%s496 + $0x48] sm:$0xff]
    %v507 = vld [vmem:[%s496 + $0x50] sm:$0xff]
    %v508 = vld [vmem:[%s496 + $0x58] sm:$0xff]
    %v509 = vld [vmem:[%s496 + $0x60] sm:$0xff]
    %v510 = vld [vmem:[%s496 + $0x68] sm:$0xff]
    %v511 = vld [vmem:[%s496 + $0x70] sm:$0xff]
    %v512 = vld [vmem:[%s496 + $0x78] sm:$0xff]
    %v513 = vld [vmem:[%s496 + $0x80] sm:$0xff]
    %v514 = vld [vmem:[%s496 + $0x88] sm:$0xff]
    %v515 = vld [vmem:[%s496 + $0x90] sm:$0xff]
    %v516 = vld [vmem:[%s496 + $0x98] sm:$0xff]
    %v517 = vld [vmem:[%s496 + $0xa0] sm:$0xff]
    %v518 = vld [vmem:[%s496 + $0xa8] sm:$0xff]
    %v519 = vld [vmem:[%s496 + $0xb0] sm:$0xff]
    %v520 = vld [vmem:[%s496 + $0xb8] sm:$0xff]
    %v521 = vld [vmem:[%s496 + $0xc0] sm:$0xff]
    %v522 = vld [vmem:[%s496 + $0xc8] sm:$0xff]
    %v523 = vld [vmem:[%s496 + $0xd0] sm:$0xff]
    %v524 = vld [vmem:[%s496 + $0xd8] sm:$0xff]
    %v525 = vld [vmem:[%s496 + $0xe0] sm:$0xff]
    %v526 = vld [vmem:[%s496 + $0xe8] sm:$0xff]
    %v527 = vld [vmem:[%s496 + $0xf0] sm:$0xff]
    %v528 = vld [vmem:[%s496 + $0xf8] sm:$0xff]
    %v529 = vld [vmem:[%s496 + $0x100] sm:$0xff]
    %v530 = vld [vmem:[%s496 + $0x108] sm:$0xff]
    %v531 = vld [vmem:[%s496 + $0x110] sm:$0xff]
    %v532 = vld [vmem:[%s496 + $0x118] sm:$0xff]
    %v533 = vld [vmem:[%s496 + $0x120] sm:$0xff]
    %v534 = vld [vmem:[%s496 + $0x128] sm:$0xff]
    %v535 = vld [vmem:[%s496 + $0x130] sm:$0xff]
    %v536 = vld [vmem:[%s496 + $0x138] sm:$0xff]
    %v537 = vld [vmem:[%s496 + $0x140] sm:$0xff]
    %v538 = vld [vmem:[%s496 + $0x148] sm:$0xff]
    %v539 = vld [vmem:[%s496 + $0x150] sm:$0xff]
    %v540 = vld [vmem:[%s496 + $0x158] sm:$0xff]
    %v541 = vld [vmem:[%s496 + $0x160] sm:$0xff]
    %v542 = vld [vmem:[%s496 + $0x168] sm:$0xff]
    %v543 = vld [vmem:[%s496 + $0x170] sm:$0xff]
    %v544 = vld [vmem:[%s496 + $0x178] sm:$0xff]
    %v545 = vld [vmem:[#allocation8 + $0x1] sm:$0x1]
    %v546 = vlaneseq
    %v547 = vshrl.u32 %v546, 7
    %v548 = vsub.s32 0, %v547
    %v549 = vrot.slane %v545, %v548
    %550 = vmatprep.subr.mxu0 0.0
    %551 = vmatpush1.msra.mxu0 %v512
    %552 = vmatprep.subr.mxu0 0.0
    %553 = vmatpush1.msra.mxu0 %v511
    %554 = vmatprep.subr.mxu0 0.0
    %555 = vmatpush1.msra.mxu0 %v510
    %556 = vmatprep.subr.mxu0 0.0
    %557 = vmatpush1.msra.mxu0 %v509
    %558 = vmatprep.subr.mxu0 0.0
    %559 = vmatpush1.msra.mxu0 %v508
    %560 = vmatprep.subr.mxu0 0.0
    %561 = vmatpush1.msra.mxu0 %v507
    %562 = vmatprep.subr.mxu0 0.0
    %563 = vmatpush1.msra.mxu0 %v506
    %564 = vmatprep.subr.mxu0 0.0
    %565 = vmatpush1.msra.mxu0 %v505
    %566 = vmatprep.subr.mxu0 0.0
    %567 = vmatpush1.msra.mxu0 %v504
    %568 = vmatprep.subr.mxu0 0.0
    %569 = vmatpush1.msra.mxu0 %v503
    %570 = vmatprep.subr.mxu0 0.0
    %571 = vmatpush1.msra.mxu0 %v502
    %572 = vmatprep.subr.mxu0 0.0
    %573 = vmatpush1.msra.mxu0 %v501
    %574 = vmatprep.subr.mxu0 0.0
    %575 = vmatpush1.msra.mxu0 %v500
    %576 = vmatprep.subr.mxu0 0.0
    %577 = vmatpush1.msra.mxu0 %v499
    %578 = vmatprep.subr.mxu0 0.0
    %579 = vmatpush1.msra.mxu0 %v498
    %580 = vmatprep.subr.mxu0 0.0
    %581 = vmatpush1.msra.mxu0 %v497
    %582 = vmatprep.subr.mxu0 0.0
    %583 = vmatpush2.msra.mxu0 %v528
    %584 = vmatprep.subr.mxu0 0.0
    %585 = vmatpush2.msra.mxu0 %v527
    %586 = vmatprep.subr.mxu0 0.0
    %587 = vmatpush2.msra.mxu0 %v526
    %588 = vmatprep.subr.mxu0 0.0
    %589 = vmatpush2.msra.mxu0 %v525
    %590 = vmatprep.subr.mxu0 0.0
    %591 = vmatpush2.msra.mxu0 %v524
    %592 = vmatprep.subr.mxu0 0.0
    %593 = vmatpush2.msra.mxu0 %v523
    %594 = vmatprep.subr.mxu0 0.0
    %595 = vmatpush2.msra.mxu0 %v522
    %596 = vmatprep.subr.mxu0 0.0
    %597 = vmatpush2.msra.mxu0 %v521
    %598 = vmatprep.subr.mxu0 0.0
    %599 = vmatpush2.msra.mxu0 %v520
    %600 = vmatprep.subr.mxu0 0.0
    %601 = vmatpush2.msra.mxu0 %v519
    %602 = vmatprep.subr.mxu0 0.0
    %603 = vmatpush2.msra.mxu0 %v518
    %604 = vmatprep.subr.mxu0 0.0
    %605 = vmatpush2.msra.mxu0 %v517
    %606 = vmatprep.subr.mxu0 0.0
    %607 = vmatpush2.msra.mxu0 %v516
    %608 = vmatprep.subr.mxu0 0.0
    %609 = vmatpush2.msra.mxu0 %v515
    %610 = vmatprep.subr.mxu0 0.0
    %611 = vmatpush2.msra.mxu0 %v514
    %612 = vmatprep.subr.mxu0 0.0
    %613 = vmatpush2.msra.mxu0 %v513
    %614 = vmatprep.mubr.f32.mxu0 %v468
    %615 = vmatmul.mubr.f32.gmra.mxu0 %v480
    %v616 = vpop.f32.mrf.mxu0
    %v617 = vadd.f32 %v549, %v616
    %v618 = vpop.f32.mrf.mxu0
    %619 = vmatprep.mubr.f32.mxu0 %v469
    %620 = vmatmul.mubr.f32.gmra.mxu0 %v481
    %v621 = vpop.f32.mrf.mxu0
    %v622 = vadd.f32 %v549, %v621
    %v623 = vpop.f32.mrf.mxu0
    %624 = vmatprep.mubr.f32.mxu0 %v470
    %625 = vmatmul.mubr.f32.gmra.mxu0 %v482
    %v626 = vpop.f32.mrf.mxu0
    %v627 = vadd.f32 %v549, %v626
    %v628 = vpop.f32.mrf.mxu0
    %629 = vmatprep.mubr.f32.mxu0 %v471
    %630 = vmatmul.mubr.f32.gmra.mxu0 %v483
    %v631 = vpop.f32.mrf.mxu0
    %v632 = vadd.f32 %v549, %v631
    %v633 = vpop.f32.mrf.mxu0
    %634 = vdwg.mxu0
    %635 = vmatprep.subr.mxu0 0.0
    %636 = vmatpush1.msra.mxu0 %v544
    %637 = vmatprep.subr.mxu0 0.0
    %638 = vmatpush1.msra.mxu0 %v543
    %639 = vmatprep.subr.mxu0 0.0
    %640 = vmatpush1.msra.mxu0 %v542
    %641 = vmatprep.subr.mxu0 0.0
    %642 = vmatpush1.msra.mxu0 %v541
    %643 = vmatprep.subr.mxu0 0.0
    %644 = vmatpush1.msra.mxu0 %v540
    %645 = vmatprep.subr.mxu0 0.0
    %646 = vmatpush1.msra.mxu0 %v539
    %647 = vmatprep.subr.mxu0 0.0
    %648 = vmatpush1.msra.mxu0 %v538
    %649 = vmatprep.subr.mxu0 0.0
    %650 = vmatpush1.msra.mxu0 %v537
    %651 = vmatprep.subr.mxu0 0.0
    %652 = vmatpush1.msra.mxu0 %v536
    %653 = vmatprep.subr.mxu0 0.0
    %654 = vmatpush1.msra.mxu0 %v535
    %655 = vmatprep.subr.mxu0 0.0
    %656 = vmatpush1.msra.mxu0 %v534
    %657 = vmatprep.subr.mxu0 0.0
    %658 = vmatpush1.msra.mxu0 %v533
    %659 = vmatprep.subr.mxu0 0.0
    %660 = vmatpush1.msra.mxu0 %v532
    %661 = vmatprep.subr.mxu0 0.0
    %662 = vmatpush1.msra.mxu0 %v531
    %663 = vmatprep.subr.mxu0 0.0
    %664 = vmatpush1.msra.mxu0 %v530
    %665 = vmatprep.subr.mxu0 0.0
    %666 = vmatpush1.msra.mxu0 %v529
    %667 = vmatprep.subr.mxu0 0.0
    %668 = vmatpush2.msra.mxu0 0.0
    %669 = vmatprep.subr.mxu0 0.0
    %670 = vmatpush2.msra.mxu0 0.0
    %671 = vmatprep.subr.mxu0 0.0
    %672 = vmatpush2.msra.mxu0 0.0
    %673 = vmatprep.subr.mxu0 0.0
    %674 = vmatpush2.msra.mxu0 0.0
    %675 = vmatprep.subr.mxu0 0.0
    %676 = vmatpush2.msra.mxu0 0.0
    %677 = vmatprep.subr.mxu0 0.0
    %678 = vmatpush2.msra.mxu0 0.0
    %679 = vmatprep.subr.mxu0 0.0
    %680 = vmatpush2.msra.mxu0 0.0
    %681 = vmatprep.subr.mxu0 0.0
    %682 = vmatpush2.msra.mxu0 0.0
    %683 = vmatprep.subr.mxu0 0.0
    %684 = vmatpush2.msra.mxu0 0.0
    %685 = vmatprep.subr.mxu0 0.0
    %686 = vmatpush2.msra.mxu0 0.0
    %687 = vmatprep.subr.mxu0 0.0
    %688 = vmatpush2.msra.mxu0 0.0
    %689 = vmatprep.subr.mxu0 0.0
    %690 = vmatpush2.msra.mxu0 0.0
    %691 = vmatprep.subr.mxu0 0.0
    %692 = vmatpush2.msra.mxu0 0.0
    %693 = vmatprep.subr.mxu0 0.0
    %694 = vmatpush2.msra.mxu0 0.0
    %695 = vmatprep.subr.mxu0 0.0
    %696 = vmatpush2.msra.mxu0 0.0
    %697 = vmatprep.subr.mxu0 0.0
    %698 = vmatpush2.msra.mxu0 0.0
    %699 = vmatprep.mubr.f32.mxu0 0.0
    %700 = vmatmul.mubr.f32.gmra.mxu0 %v492
    %v701 = vpop.f32.mrf.mxu0
    %v702 = vadd.f32 %v617, %v701
    %v703 = vpop.f32.mrf.mxu0
    %704 = vmatprep.mubr.f32.mxu0 0.0
    %705 = vmatmul.mubr.f32.gmra.mxu0 %v493
    %v706 = vpop.f32.mrf.mxu0
    %v707 = vadd.f32 %v622, %v706
    %v708 = vpop.f32.mrf.mxu0
    %709 = vmatprep.mubr.f32.mxu0 0.0
    %710 = vmatmul.mubr.f32.gmra.mxu0 %v494
    %v711 = vpop.f32.mrf.mxu0
    %v712 = vadd.f32 %v627, %v711
    %v713 = vpop.f32.mrf.mxu0
    %714 = vmatprep.mubr.f32.mxu0 0.0
    %715 = vmatmul.mubr.f32.gmra.mxu0 %v495
    %v716 = vpop.f32.mrf.mxu0
    %v717 = vadd.f32 %v632, %v716
    %v718 = vpop.f32.mrf.mxu0
    %719 = vdwg.mxu0
    %vm720 = vcmp.ge.f32.partialorder %v702, 0.0
    %vm721 = vcmp.ge.f32.partialorder %v707, 0.0
    %vm722 = vcmp.ge.f32.partialorder %v712, 0.0
    %vm723 = vcmp.ge.f32.partialorder %v717, 0.0
    %v724 = vmul.f32 %v702, %v395
    %v725 = vmul.f32 %v707, %v395
    %v726 = vmul.f32 %v712, %v395
    %v727 = vmul.f32 %v717, %v395
    %v728 = vsel %vm720, %v702, %v724
    %v729 = vsel %vm721, %v707, %v725
    %v730 = vsel %vm722, %v712, %v726
    %v731 = vsel %vm723, %v717, %v727
    %v732 = vadd.f32 %v728, %v729
    %v733 = vadd.f32 %v732, %v730
    %v734 = vadd.f32 %v733, %v731
    %v735 = vrot.slane %v734, 4
    %v736 = vadd.f32 %v734, %v735
    %v737 = vrot.slane %v736, 2
    %v738 = vadd.f32 %v736, %v737
    %v739 = vrot.slane %v738, 1
    %v740 = vadd.f32 %v738, %v739
    %v741 = vmul.f32 %v728, %v728
    %v742 = vmul.f32 %v729, %v729
    %v743 = vmul.f32 %v730, %v730
    %v744 = vmul.f32 %v731, %v731
    %v745 = vadd.f32 %v741, %v742
    %v746 = vadd.f32 %v745, %v743
    %v747 = vadd.f32 %v746, %v744
    %v748 = vrot.slane %v747, 4
    %v749 = vadd.f32 %v747, %v748
    %v750 = vrot.slane %v749, 2
    %v751 = vadd.f32 %v749, %v750
    %v752 = vrot.slane %v751, 1
    %v753 = vadd.f32 %v751, %v752
    %v754 = vsel %vm426, %v740, %v753
    %755 = vrot.lane.b32.xlu0 %v754, 8
    %v756 = vpop.permute.xlu0 %755
    %v757 = vadd.f32 %v754, %v756
    %758 = vrot.lane.b32.xlu0 %v757, 16
    %v759 = vpop.permute.xlu0 %758
    %v760 = vadd.f32 %v757, %v759
    %761 = vrot.lane.b32.xlu0 %v760, 32
    %v762 = vpop.permute.xlu0 %761
    %v763 = vadd.f32 %v760, %v762
    %764 = vrot.lane.b32.xlu0 %v763, 64
    %v765 = vpop.permute.xlu0 %764
    %v766 = vadd.f32 %v763, %v765
    %v767 = vmul.f32 %v766, 0.001953125
    %v768 = vmul.f32 %v767, %v767
    %v770 = vrot.slane %v768, 7
    %v772 = vsub.f32 %v767, %v770
    %v773 = vld [vmem:[#allocation9 + $0x1] sm:$0x1]
    %v774 = vadd.f32 %v772, 1e-05
    %v775 = vrsqrt.pop %v774
    %v777 = vrot.slane %v775, 1
    %v779 = vmul.f32 %v773, %v777
    %v780 = vld [vmem:[%s5 + $0x1] sm:$0x1]
    %v781 = vmul.f32 %v767, %v779
    %v782 = vsub.f32 %v780, %v781
    %v783 = vlaneseq
    %v784 = vshrl.u32 %v783, 7
    %v785 = vsub.s32 0, %v784
    %v786 = vrot.slane %v779, %v785
    %v787 = vmul.f32 %v728, %v786
    %v788 = vmul.f32 %v729, %v786
    %v789 = vmul.f32 %v730, %v786
    %v790 = vmul.f32 %v731, %v786
    %v791 = vlaneseq
    %v792 = vshrl.u32 %v791, 7
    %v793 = vsub.s32 0, %v792
    %v794 = vrot.slane %v782, %v793
    %v795 = vadd.f32 %v787, %v794
    %v796 = vadd.f32 %v788, %v794
    %v797 = vadd.f32 %v789, %v794
    %v798 = vadd.f32 %v790, %v794
    %v799 = vadd.f32 %v468, %v795
    %v800 = vadd.f32 %v469, %v796
    %v801 = vadd.f32 %v470, %v797
    %v802 = vadd.f32 %v471, %v798
    %v803 = vrot.slane %v799, 7
    %v804 = vrot.slane %v800, 7
    %v805 = vrot.slane %v801, 7
    %v806 = vrot.slane %v802, 7
    %v807 = vsel %vm146, %v805, %v806
    %v808 = vsel %vm146, %v804, %v805
    %v809 = vsel %vm146, %v803, %v804
    %v810 = vsel %vm146, %v806, %v803
    %v811 = vsel %vm130, %v810, 0.0
    %v812 = vsel %vm131, %v809, 0.0
    %v813 = vsel %vm132, %v808, 0.0
    %v814 = vsel %vm133, %v807, 0.0
    %v815 = vrot.slane %v799, 1
    %v816 = vrot.slane %v800, 1
    %v817 = vrot.slane %v801, 1
    %v818 = vrot.slane %v802, 1
    %v819 = vsel %vm159, %v817, %v818
    %v820 = vsel %vm159, %v816, %v817
    %v821 = vsel %vm159, %v815, %v816
    %v822 = vsel %vm159, %v818, %v815
    %v823 = vsel %vm134, %v821, 0.0
    %v824 = vsel %vm135, %v820, 0.0
    %v825 = vsel %vm136, %v819, 0.0
    %v826 = vsel %vm137, %v822, 0.0
    %s827 = scalar_lea.vmem [#allocation6], 768
    %v828 = vld [vmem:[%s827] sm:$0xff]
    %v829 = vld [vmem:[%s827 + $0x8] sm:$0xff]
    %v830 = vld [vmem:[%s827 + $0x10] sm:$0xff]
    %v831 = vld [vmem:[%s827 + $0x18] sm:$0xff]
    %v832 = vld [vmem:[%s827 + $0x20] sm:$0xff]
    %v833 = vld [vmem:[%s827 + $0x28] sm:$0xff]
    %v834 = vld [vmem:[%s827 + $0x30] sm:$0xff]
    %v835 = vld [vmem:[%s827 + $0x38] sm:$0xff]
    %v836 = vld [vmem:[%s827 + $0x40] sm:$0xff]
    %v837 = vld [vmem:[%s827 + $0x48] sm:$0xff]
    %v838 = vld [vmem:[%s827 + $0x50] sm:$0xff]
    %v839 = vld [vmem:[%s827 + $0x58] sm:$0xff]
    %v840 = vld [vmem:[%s827 + $0x60] sm:$0xff]
    %v841 = vld [vmem:[%s827 + $0x68] sm:$0xff]
    %v842 = vld [vmem:[%s827 + $0x70] sm:$0xff]
    %v843 = vld [vmem:[%s827 + $0x78] sm:$0xff]
    %v844 = vld [vmem:[%s827 + $0x80] sm:$0xff]
    %v845 = vld [vmem:[%s827 + $0x88] sm:$0xff]
    %v846 = vld [vmem:[%s827 + $0x90] sm:$0xff]
    %v847 = vld [vmem:[%s827 + $0x98] sm:$0xff]
    %v848 = vld [vmem:[%s827 + $0xa0] sm:$0xff]
    %v849 = vld [vmem:[%s827 + $0xa8] sm:$0xff]
    %v850 = vld [vmem:[%s827 + $0xb0] sm:$0xff]
    %v851 = vld [vmem:[%s827 + $0xb8] sm:$0xff]
    %v852 = vld [vmem:[%s827 + $0xc0] sm:$0xff]
    %v853 = vld [vmem:[%s827 + $0xc8] sm:$0xff]
    %v854 = vld [vmem:[%s827 + $0xd0] sm:$0xff]
    %v855 = vld [vmem:[%s827 + $0xd8] sm:$0xff]
    %v856 = vld [vmem:[%s827 + $0xe0] sm:$0xff]
    %v857 = vld [vmem:[%s827 + $0xe8] sm:$0xff]
    %v858 = vld [vmem:[%s827 + $0xf0] sm:$0xff]
    %v859 = vld [vmem:[%s827 + $0xf8] sm:$0xff]
    %v860 = vld [vmem:[%s827 + $0x100] sm:$0xff]
    %v861 = vld [vmem:[%s827 + $0x108] sm:$0xff]
    %v862 = vld [vmem:[%s827 + $0x110] sm:$0xff]
    %v863 = vld [vmem:[%s827 + $0x118] sm:$0xff]
    %v864 = vld [vmem:[%s827 + $0x120] sm:$0xff]
    %v865 = vld [vmem:[%s827 + $0x128] sm:$0xff]
    %v866 = vld [vmem:[%s827 + $0x130] sm:$0xff]
    %v867 = vld [vmem:[%s827 + $0x138] sm:$0xff]
    %v868 = vld [vmem:[%s827 + $0x140] sm:$0xff]
    %v869 = vld [vmem:[%s827 + $0x148] sm:$0xff]
    %v870 = vld [vmem:[%s827 + $0x150] sm:$0xff]
    %v871 = vld [vmem:[%s827 + $0x158] sm:$0xff]
    %v872 = vld [vmem:[%s827 + $0x160] sm:$0xff]
    %v873 = vld [vmem:[%s827 + $0x168] sm:$0xff]
    %v874 = vld [vmem:[%s827 + $0x170] sm:$0xff]
    %v875 = vld [vmem:[%s827 + $0x178] sm:$0xff]
    %v876 = vld [vmem:[#allocation8 + $0x2] sm:$0x1]
    %v877 = vlaneseq
    %v878 = vshrl.u32 %v877, 7
    %v879 = vsub.s32 0, %v878
    %v880 = vrot.slane %v876, %v879
    %881 = vmatprep.subr.mxu0 0.0
    %882 = vmatpush1.msra.mxu0 %v843
    %883 = vmatprep.subr.mxu0 0.0
    %884 = vmatpush1.msra.mxu0 %v842
    %885 = vmatprep.subr.mxu0 0.0
    %886 = vmatpush1.msra.mxu0 %v841
    %887 = vmatprep.subr.mxu0 0.0
    %888 = vmatpush1.msra.mxu0 %v840
    %889 = vmatprep.subr.mxu0 0.0
    %890 = vmatpush1.msra.mxu0 %v839
    %891 = vmatprep.subr.mxu0 0.0
    %892 = vmatpush1.msra.mxu0 %v838
    %893 = vmatprep.subr.mxu0 0.0
    %894 = vmatpush1.msra.mxu0 %v837
    %895 = vmatprep.subr.mxu0 0.0
    %896 = vmatpush1.msra.mxu0 %v836
    %897 = vmatprep.subr.mxu0 0.0
    %898 = vmatpush1.msra.mxu0 %v835
    %899 = vmatprep.subr.mxu0 0.0
    %900 = vmatpush1.msra.mxu0 %v834
    %901 = vmatprep.subr.mxu0 0.0
    %902 = vmatpush1.msra.mxu0 %v833
    %903 = vmatprep.subr.mxu0 0.0
    %904 = vmatpush1.msra.mxu0 %v832
    %905 = vmatprep.subr.mxu0 0.0
    %906 = vmatpush1.msra.mxu0 %v831
    %907 = vmatprep.subr.mxu0 0.0
    %908 = vmatpush1.msra.mxu0 %v830
    %909 = vmatprep.subr.mxu0 0.0
    %910 = vmatpush1.msra.mxu0 %v829
    %911 = vmatprep.subr.mxu0 0.0
    %912 = vmatpush1.msra.mxu0 %v828
    %913 = vmatprep.subr.mxu0 0.0
    %914 = vmatpush2.msra.mxu0 %v859
    %915 = vmatprep.subr.mxu0 0.0
    %916 = vmatpush2.msra.mxu0 %v858
    %917 = vmatprep.subr.mxu0 0.0
    %918 = vmatpush2.msra.mxu0 %v857
    %919 = vmatprep.subr.mxu0 0.0
    %920 = vmatpush2.msra.mxu0 %v856
    %921 = vmatprep.subr.mxu0 0.0
    %922 = vmatpush2.msra.mxu0 %v855
    %923 = vmatprep.subr.mxu0 0.0
    %924 = vmatpush2.msra.mxu0 %v854
    %925 = vmatprep.subr.mxu0 0.0
    %926 = vmatpush2.msra.mxu0 %v853
    %927 = vmatprep.subr.mxu0 0.0
    %928 = vmatpush2.msra.mxu0 %v852
    %929 = vmatprep.subr.mxu0 0.0
    %930 = vmatpush2.msra.mxu0 %v851
    %931 = vmatprep.subr.mxu0 0.0
    %932 = vmatpush2.msra.mxu0 %v850
    %933 = vmatprep.subr.mxu0 0.0
    %934 = vmatpush2.msra.mxu0 %v849
    %935 = vmatprep.subr.mxu0 0.0
    %936 = vmatpush2.msra.mxu0 %v848
    %937 = vmatprep.subr.mxu0 0.0
    %938 = vmatpush2.msra.mxu0 %v847
    %939 = vmatprep.subr.mxu0 0.0
    %940 = vmatpush2.msra.mxu0 %v846
    %941 = vmatprep.subr.mxu0 0.0
    %942 = vmatpush2.msra.mxu0 %v845
    %943 = vmatprep.subr.mxu0 0.0
    %944 = vmatpush2.msra.mxu0 %v844
    %945 = vmatprep.mubr.f32.mxu0 %v799
    %946 = vmatmul.mubr.f32.gmra.mxu0 %v811
    %v947 = vpop.f32.mrf.mxu0
    %v948 = vadd.f32 %v880, %v947
    %v949 = vpop.f32.mrf.mxu0
    %950 = vmatprep.mubr.f32.mxu0 %v800
    %951 = vmatmul.mubr.f32.gmra.mxu0 %v812
    %v952 = vpop.f32.mrf.mxu0
    %v953 = vadd.f32 %v880, %v952
    %v954 = vpop.f32.mrf.mxu0
    %955 = vmatprep.mubr.f32.mxu0 %v801
    %956 = vmatmul.mubr.f32.gmra.mxu0 %v813
    %v957 = vpop.f32.mrf.mxu0
    %v958 = vadd.f32 %v880, %v957
    %v959 = vpop.f32.mrf.mxu0
    %960 = vmatprep.mubr.f32.mxu0 %v802
    %961 = vmatmul.mubr.f32.gmra.mxu0 %v814
    %v962 = vpop.f32.mrf.mxu0
    %v963 = vadd.f32 %v880, %v962
    %v964 = vpop.f32.mrf.mxu0
    %965 = vdwg.mxu0
    %966 = vmatprep.subr.mxu0 0.0
    %967 = vmatpush1.msra.mxu0 %v875
    %968 = vmatprep.subr.mxu0 0.0
    %969 = vmatpush1.msra.mxu0 %v874
    %970 = vmatprep.subr.mxu0 0.0
    %971 = vmatpush1.msra.mxu0 %v873
    %972 = vmatprep.subr.mxu0 0.0
    %973 = vmatpush1.msra.mxu0 %v872
    %974 = vmatprep.subr.mxu0 0.0
    %975 = vmatpush1.msra.mxu0 %v871
    %976 = vmatprep.subr.mxu0 0.0
    %977 = vmatpush1.msra.mxu0 %v870
    %978 = vmatprep.subr.mxu0 0.0
    %979 = vmatpush1.msra.mxu0 %v869
    %980 = vmatprep.subr.mxu0 0.0
    %981 = vmatpush1.msra.mxu0 %v868
    %982 = vmatprep.subr.mxu0 0.0
    %983 = vmatpush1.msra.mxu0 %v867
    %984 = vmatprep.subr.mxu0 0.0
    %985 = vmatpush1.msra.mxu0 %v866
    %986 = vmatprep.subr.mxu0 0.0
    %987 = vmatpush1.msra.mxu0 %v865
    %988 = vmatprep.subr.mxu0 0.0
    %989 = vmatpush1.msra.mxu0 %v864
    %990 = vmatprep.subr.mxu0 0.0
    %991 = vmatpush1.msra.mxu0 %v863
    %992 = vmatprep.subr.mxu0 0.0
    %993 = vmatpush1.msra.mxu0 %v862
    %994 = vmatprep.subr.mxu0 0.0
    %995 = vmatpush1.msra.mxu0 %v861
    %996 = vmatprep.subr.mxu0 0.0
    %997 = vmatpush1.msra.mxu0 %v860
    %998 = vmatprep.subr.mxu0 0.0
    %999 = vmatpush2.msra.mxu0 0.0
    %1000 = vmatprep.subr.mxu0 0.0
    %1001 = vmatpush2.msra.mxu0 0.0
    %1002 = vmatprep.subr.mxu0 0.0
    %1003 = vmatpush2.msra.mxu0 0.0
    %1004 = vmatprep.subr.mxu0 0.0
    %1005 = vmatpush2.msra.mxu0 0.0
    %1006 = vmatprep.subr.mxu0 0.0
    %1007 = vmatpush2.msra.mxu0 0.0
    %1008 = vmatprep.subr.mxu0 0.0
    %1009 = vmatpush2.msra.mxu0 0.0
    %1010 = vmatprep.subr.mxu0 0.0
    %1011 = vmatpush2.msra.mxu0 0.0
    %1012 = vmatprep.subr.mxu0 0.0
    %1013 = vmatpush2.msra.mxu0 0.0
    %1014 = vmatprep.subr.mxu0 0.0
    %1015 = vmatpush2.msra.mxu0 0.0
    %1016 = vmatprep.subr.mxu0 0.0
    %1017 = vmatpush2.msra.mxu0 0.0
    %1018 = vmatprep.subr.mxu0 0.0
    %1019 = vmatpush2.msra.mxu0 0.0
    %1020 = vmatprep.subr.mxu0 0.0
    %1021 = vmatpush2.msra.mxu0 0.0
    %1022 = vmatprep.subr.mxu0 0.0
    %1023 = vmatpush2.msra.mxu0 0.0
    %1024 = vmatprep.subr.mxu0 0.0
    %1025 = vmatpush2.msra.mxu0 0.0
    %1026 = vmatprep.subr.mxu0 0.0
    %1027 = vmatpush2.msra.mxu0 0.0
    %1028 = vmatprep.subr.mxu0 0.0
    %1029 = vmatpush2.msra.mxu0 0.0
    %1030 = vmatprep.mubr.f32.mxu0 0.0
    %1031 = vmatmul.mubr.f32.gmra.mxu0 %v823
    %v1032 = vpop.f32.mrf.mxu0
    %v1033 = vadd.f32 %v948, %v1032
    %v1034 = vpop.f32.mrf.mxu0
    %1035 = vmatprep.mubr.f32.mxu0 0.0
    %1036 = vmatmul.mubr.f32.gmra.mxu0 %v824
    %v1037 = vpop.f32.mrf.mxu0
    %v1038 = vadd.f32 %v953, %v1037
    %v1039 = vpop.f32.mrf.mxu0
    %1040 = vmatprep.mubr.f32.mxu0 0.0
    %1041 = vmatmul.mubr.f32.gmra.mxu0 %v825
    %v1042 = vpop.f32.mrf.mxu0
    %v1043 = vadd.f32 %v958, %v1042
    %v1044 = vpop.f32.mrf.mxu0
    %1045 = vmatprep.mubr.f32.mxu0 0.0
    %1046 = vmatmul.mubr.f32.gmra.mxu0 %v826
    %v1047 = vpop.f32.mrf.mxu0
    %v1048 = vadd.f32 %v963, %v1047
    %v1049 = vpop.f32.mrf.mxu0
    %1050 = vdwg.mxu0
    %vm1051 = vcmp.ge.f32.partialorder %v1033, 0.0
    %vm1052 = vcmp.ge.f32.partialorder %v1038, 0.0
    %vm1053 = vcmp.ge.f32.partialorder %v1043, 0.0
    %vm1054 = vcmp.ge.f32.partialorder %v1048, 0.0
    %v1055 = vmul.f32 %v1033, %v395
    %v1056 = vmul.f32 %v1038, %v395
    %v1057 = vmul.f32 %v1043, %v395
    %v1058 = vmul.f32 %v1048, %v395
    %v1059 = vsel %vm1051, %v1033, %v1055
    %v1060 = vsel %vm1052, %v1038, %v1056
    %v1061 = vsel %vm1053, %v1043, %v1057
    %v1062 = vsel %vm1054, %v1048, %v1058
    %v1063 = vadd.f32 %v1059, %v1060
    %v1064 = vadd.f32 %v1063, %v1061
    %v1065 = vadd.f32 %v1064, %v1062
    %v1066 = vrot.slane %v1065, 4
    %v1067 = vadd.f32 %v1065, %v1066
    %v1068 = vrot.slane %v1067, 2
    %v1069 = vadd.f32 %v1067, %v1068
    %v1070 = vrot.slane %v1069, 1
    %v1071 = vadd.f32 %v1069, %v1070
    %v1072 = vmul.f32 %v1059, %v1059
    %v1073 = vmul.f32 %v1060, %v1060
    %v1074 = vmul.f32 %v1061, %v1061
    %v1075 = vmul.f32 %v1062, %v1062
    %v1076 = vadd.f32 %v1072, %v1073
    %v1077 = vadd.f32 %v1076, %v1074
    %v1078 = vadd.f32 %v1077, %v1075
    %v1079 = vrot.slane %v1078, 4
    %v1080 = vadd.f32 %v1078, %v1079
    %v1081 = vrot.slane %v1080, 2
    %v1082 = vadd.f32 %v1080, %v1081
    %v1083 = vrot.slane %v1082, 1
    %v1084 = vadd.f32 %v1082, %v1083
    %v1085 = vsel %vm426, %v1071, %v1084
    %1086 = vrot.lane.b32.xlu0 %v1085, 8
    %v1087 = vpop.permute.xlu0 %1086
    %v1088 = vadd.f32 %v1085, %v1087
    %1089 = vrot.lane.b32.xlu0 %v1088, 16
    %v1090 = vpop.permute.xlu0 %1089
    %v1091 = vadd.f32 %v1088, %v1090
    %1092 = vrot.lane.b32.xlu0 %v1091, 32
    %v1093 = vpop.permute.xlu0 %1092
    %v1094 = vadd.f32 %v1091, %v1093
    %1095 = vrot.lane.b32.xlu0 %v1094, 64
    %v1096 = vpop.permute.xlu0 %1095
    %v1097 = vadd.f32 %v1094, %v1096
    %v1098 = vmul.f32 %v1097, 0.001953125
    %v1099 = vmul.f32 %v1098, %v1098
    %v1101 = vrot.slane %v1099, 7
    %v1103 = vsub.f32 %v1098, %v1101
    %v1104 = vld [vmem:[#allocation9 + $0x2] sm:$0x1]
    %v1105 = vadd.f32 %v1103, 1e-05
    %v1106 = vrsqrt.pop %v1105
    %v1108 = vrot.slane %v1106, 1
    %v1110 = vmul.f32 %v1104, %v1108
    %v1111 = vld [vmem:[%s5 + $0x2] sm:$0x1]
    %v1112 = vmul.f32 %v1098, %v1110
    %v1113 = vsub.f32 %v1111, %v1112
    %v1114 = vlaneseq
    %v1115 = vshrl.u32 %v1114, 7
    %v1116 = vsub.s32 0, %v1115
    %v1117 = vrot.slane %v1110, %v1116
    %v1118 = vmul.f32 %v1059, %v1117
    %v1119 = vmul.f32 %v1060, %v1117
    %v1120 = vmul.f32 %v1061, %v1117
    %v1121 = vmul.f32 %v1062, %v1117
    %v1122 = vlaneseq
    %v1123 = vshrl.u32 %v1122, 7
    %v1124 = vsub.s32 0, %v1123
    %v1125 = vrot.slane %v1113, %v1124
    %v1126 = vadd.f32 %v1118, %v1125
    %v1127 = vadd.f32 %v1119, %v1125
    %v1128 = vadd.f32 %v1120, %v1125
    %v1129 = vadd.f32 %v1121, %v1125
    %v1130 = vadd.f32 %v799, %v1126
    %v1131 = vadd.f32 %v800, %v1127
    %v1132 = vadd.f32 %v801, %v1128
    %v1133 = vadd.f32 %v802, %v1129
    %v1134 = vrot.slane %v1130, 7
    %v1135 = vrot.slane %v1131, 7
    %v1136 = vrot.slane %v1132, 7
    %v1137 = vrot.slane %v1133, 7
    %v1138 = vsel %vm146, %v1136, %v1137
    %v1139 = vsel %vm146, %v1135, %v1136
    %v1140 = vsel %vm146, %v1134, %v1135
    %v1141 = vsel %vm146, %v1137, %v1134
    %v1142 = vsel %vm130, %v1141, 0.0
    %v1143 = vsel %vm131, %v1140, 0.0
    %v1144 = vsel %vm132, %v1139, 0.0
    %v1145 = vsel %vm133, %v1138, 0.0
    %v1146 = vrot.slane %v1130, 1
    %v1147 = vrot.slane %v1131, 1
    %v1148 = vrot.slane %v1132, 1
    %v1149 = vrot.slane %v1133, 1
    %v1150 = vsel %vm159, %v1148, %v1149
    %v1151 = vsel %vm159, %v1147, %v1148
    %v1152 = vsel %vm159, %v1146, %v1147
    %v1153 = vsel %vm159, %v1149, %v1146
    %v1154 = vsel %vm134, %v1152, 0.0
    %v1155 = vsel %vm135, %v1151, 0.0
    %v1156 = vsel %vm136, %v1150, 0.0
    %v1157 = vsel %vm137, %v1153, 0.0
    %s1158 = scalar_lea.vmem [#allocation6], 1152
    %v1159 = vld [vmem:[%s1158] sm:$0xff]
    %v1160 = vld [vmem:[%s1158 + $0x8] sm:$0xff]
    %v1161 = vld [vmem:[%s1158 + $0x10] sm:$0xff]
    %v1162 = vld [vmem:[%s1158 + $0x18] sm:$0xff]
    %v1163 = vld [vmem:[%s1158 + $0x20] sm:$0xff]
    %v1164 = vld [vmem:[%s1158 + $0x28] sm:$0xff]
    %v1165 = vld [vmem:[%s1158 + $0x30] sm:$0xff]
    %v1166 = vld [vmem:[%s1158 + $0x38] sm:$0xff]
    %v1167 = vld [vmem:[%s1158 + $0x40] sm:$0xff]
    %v1168 = vld [vmem:[%s1158 + $0x48] sm:$0xff]
    %v1169 = vld [vmem:[%s1158 + $0x50] sm:$0xff]
    %v1170 = vld [vmem:[%s1158 + $0x58] sm:$0xff]
    %v1171 = vld [vmem:[%s1158 + $0x60] sm:$0xff]
    %v1172 = vld [vmem:[%s1158 + $0x68] sm:$0xff]
    %v1173 = vld [vmem:[%s1158 + $0x70] sm:$0xff]
    %v1174 = vld [vmem:[%s1158 + $0x78] sm:$0xff]
    %v1175 = vld [vmem:[%s1158 + $0x80] sm:$0xff]
    %v1176 = vld [vmem:[%s1158 + $0x88] sm:$0xff]
    %v1177 = vld [vmem:[%s1158 + $0x90] sm:$0xff]
    %v1178 = vld [vmem:[%s1158 + $0x98] sm:$0xff]
    %v1179 = vld [vmem:[%s1158 + $0xa0] sm:$0xff]
    %v1180 = vld [vmem:[%s1158 + $0xa8] sm:$0xff]
    %v1181 = vld [vmem:[%s1158 + $0xb0] sm:$0xff]
    %v1182 = vld [vmem:[%s1158 + $0xb8] sm:$0xff]
    %v1183 = vld [vmem:[%s1158 + $0xc0] sm:$0xff]
    %v1184 = vld [vmem:[%s1158 + $0xc8] sm:$0xff]
    %v1185 = vld [vmem:[%s1158 + $0xd0] sm:$0xff]
    %v1186 = vld [vmem:[%s1158 + $0xd8] sm:$0xff]
    %v1187 = vld [vmem:[%s1158 + $0xe0] sm:$0xff]
    %v1188 = vld [vmem:[%s1158 + $0xe8] sm:$0xff]
    %v1189 = vld [vmem:[%s1158 + $0xf0] sm:$0xff]
    %v1190 = vld [vmem:[%s1158 + $0xf8] sm:$0xff]
    %v1191 = vld [vmem:[%s1158 + $0x100] sm:$0xff]
    %v1192 = vld [vmem:[%s1158 + $0x108] sm:$0xff]
    %v1193 = vld [vmem:[%s1158 + $0x110] sm:$0xff]
    %v1194 = vld [vmem:[%s1158 + $0x118] sm:$0xff]
    %v1195 = vld [vmem:[%s1158 + $0x120] sm:$0xff]
    %v1196 = vld [vmem:[%s1158 + $0x128] sm:$0xff]
    %v1197 = vld [vmem:[%s1158 + $0x130] sm:$0xff]
    %v1198 = vld [vmem:[%s1158 + $0x138] sm:$0xff]
    %v1199 = vld [vmem:[%s1158 + $0x140] sm:$0xff]
    %v1200 = vld [vmem:[%s1158 + $0x148] sm:$0xff]
    %v1201 = vld [vmem:[%s1158 + $0x150] sm:$0xff]
    %v1202 = vld [vmem:[%s1158 + $0x158] sm:$0xff]
    %v1203 = vld [vmem:[%s1158 + $0x160] sm:$0xff]
    %v1204 = vld [vmem:[%s1158 + $0x168] sm:$0xff]
    %v1205 = vld [vmem:[%s1158 + $0x170] sm:$0xff]
    %v1206 = vld [vmem:[%s1158 + $0x178] sm:$0xff]
    %v1207 = vld [vmem:[#allocation8 + $0x3] sm:$0x1]
    %v1208 = vlaneseq
    %v1209 = vshrl.u32 %v1208, 7
    %v1210 = vsub.s32 0, %v1209
    %v1211 = vrot.slane %v1207, %v1210
    %1212 = vmatprep.subr.mxu0 0.0
    %1213 = vmatpush1.msra.mxu0 %v1174
    %1214 = vmatprep.subr.mxu0 0.0
    %1215 = vmatpush1.msra.mxu0 %v1173
    %1216 = vmatprep.subr.mxu0 0.0
    %1217 = vmatpush1.msra.mxu0 %v1172
    %1218 = vmatprep.subr.mxu0 0.0
    %1219 = vmatpush1.msra.mxu0 %v1171
    %1220 = vmatprep.subr.mxu0 0.0
    %1221 = vmatpush1.msra.mxu0 %v1170
    %1222 = vmatprep.subr.mxu0 0.0
    %1223 = vmatpush1.msra.mxu0 %v1169
    %1224 = vmatprep.subr.mxu0 0.0
    %1225 = vmatpush1.msra.mxu0 %v1168
    %1226 = vmatprep.subr.mxu0 0.0
    %1227 = vmatpush1.msra.mxu0 %v1167
    %1228 = vmatprep.subr.mxu0 0.0
    %1229 = vmatpush1.msra.mxu0 %v1166
    %1230 = vmatprep.subr.mxu0 0.0
    %1231 = vmatpush1.msra.mxu0 %v1165
    %1232 = vmatprep.subr.mxu0 0.0
    %1233 = vmatpush1.msra.mxu0 %v1164
    %1234 = vmatprep.subr.mxu0 0.0
    %1235 = vmatpush1.msra.mxu0 %v1163
    %1236 = vmatprep.subr.mxu0 0.0
    %1237 = vmatpush1.msra.mxu0 %v1162
    %1238 = vmatprep.subr.mxu0 0.0
    %1239 = vmatpush1.msra.mxu0 %v1161
    %1240 = vmatprep.subr.mxu0 0.0
    %1241 = vmatpush1.msra.mxu0 %v1160
    %1242 = vmatprep.subr.mxu0 0.0
    %1243 = vmatpush1.msra.mxu0 %v1159
    %1244 = vmatprep.subr.mxu0 0.0
    %1245 = vmatpush2.msra.mxu0 %v1190
    %1246 = vmatprep.subr.mxu0 0.0
    %1247 = vmatpush2.msra.mxu0 %v1189
    %1248 = vmatprep.subr.mxu0 0.0
    %1249 = vmatpush2.msra.mxu0 %v1188
    %1250 = vmatprep.subr.mxu0 0.0
    %1251 = vmatpush2.msra.mxu0 %v1187
    %1252 = vmatprep.subr.mxu0 0.0
    %1253 = vmatpush2.msra.mxu0 %v1186
    %1254 = vmatprep.subr.mxu0 0.0
    %1255 = vmatpush2.msra.mxu0 %v1185
    %1256 = vmatprep.subr.mxu0 0.0
    %1257 = vmatpush2.msra.mxu0 %v1184
    %1258 = vmatprep.subr.mxu0 0.0
    %1259 = vmatpush2.msra.mxu0 %v1183
    %1260 = vmatprep.subr.mxu0 0.0
    %1261 = vmatpush2.msra.mxu0 %v1182
    %1262 = vmatprep.subr.mxu0 0.0
    %1263 = vmatpush2.msra.mxu0 %v1181
    %1264 = vmatprep.subr.mxu0 0.0
    %1265 = vmatpush2.msra.mxu0 %v1180
    %1266 = vmatprep.subr.mxu0 0.0
    %1267 = vmatpush2.msra.mxu0 %v1179
    %1268 = vmatprep.subr.mxu0 0.0
    %1269 = vmatpush2.msra.mxu0 %v1178
    %1270 = vmatprep.subr.mxu0 0.0
    %1271 = vmatpush2.msra.mxu0 %v1177
    %1272 = vmatprep.subr.mxu0 0.0
    %1273 = vmatpush2.msra.mxu0 %v1176
    %1274 = vmatprep.subr.mxu0 0.0
    %1275 = vmatpush2.msra.mxu0 %v1175
    %1276 = vmatprep.mubr.f32.mxu0 %v1130
    %1277 = vmatmul.mubr.f32.gmra.mxu0 %v1142
    %v1278 = vpop.f32.mrf.mxu0
    %v1279 = vadd.f32 %v1211, %v1278
    %v1280 = vpop.f32.mrf.mxu0
    %1281 = vmatprep.mubr.f32.mxu0 %v1131
    %1282 = vmatmul.mubr.f32.gmra.mxu0 %v1143
    %v1283 = vpop.f32.mrf.mxu0
    %v1284 = vadd.f32 %v1211, %v1283
    %v1285 = vpop.f32.mrf.mxu0
    %1286 = vmatprep.mubr.f32.mxu0 %v1132
    %1287 = vmatmul.mubr.f32.gmra.mxu0 %v1144
    %v1288 = vpop.f32.mrf.mxu0
    %v1289 = vadd.f32 %v1211, %v1288
    %v1290 = vpop.f32.mrf.mxu0
    %1291 = vmatprep.mubr.f32.mxu0 %v1133
    %1292 = vmatmul.mubr.f32.gmra.mxu0 %v1145
    %v1293 = vpop.f32.mrf.mxu0
    %v1294 = vadd.f32 %v1211, %v1293
    %v1295 = vpop.f32.mrf.mxu0
    %1296 = vdwg.mxu0
    %1297 = vmatprep.subr.mxu0 0.0
    %1298 = vmatpush1.msra.mxu0 %v1206
    %1299 = vmatprep.subr.mxu0 0.0
    %1300 = vmatpush1.msra.mxu0 %v1205
    %1301 = vmatprep.subr.mxu0 0.0
    %1302 = vmatpush1.msra.mxu0 %v1204
    %1303 = vmatprep.subr.mxu0 0.0
    %1304 = vmatpush1.msra.mxu0 %v1203
    %1305 = vmatprep.subr.mxu0 0.0
    %1306 = vmatpush1.msra.mxu0 %v1202
    %1307 = vmatprep.subr.mxu0 0.0
    %1308 = vmatpush1.msra.mxu0 %v1201
    %1309 = vmatprep.subr.mxu0 0.0
    %1310 = vmatpush1.msra.mxu0 %v1200
    %1311 = vmatprep.subr.mxu0 0.0
    %1312 = vmatpush1.msra.mxu0 %v1199
    %1313 = vmatprep.subr.mxu0 0.0
    %1314 = vmatpush1.msra.mxu0 %v1198
    %1315 = vmatprep.subr.mxu0 0.0
    %1316 = vmatpush1.msra.mxu0 %v1197
    %1317 = vmatprep.subr.mxu0 0.0
    %1318 = vmatpush1.msra.mxu0 %v1196
    %1319 = vmatprep.subr.mxu0 0.0
    %1320 = vmatpush1.msra.mxu0 %v1195
    %1321 = vmatprep.subr.mxu0 0.0
    %1322 = vmatpush1.msra.mxu0 %v1194
    %1323 = vmatprep.subr.mxu0 0.0
    %1324 = vmatpush1.msra.mxu0 %v1193
    %1325 = vmatprep.subr.mxu0 0.0
    %1326 = vmatpush1.msra.mxu0 %v1192
    %1327 = vmatprep.subr.mxu0 0.0
    %1328 = vmatpush1.msra.mxu0 %v1191
    %1329 = vmatprep.subr.mxu0 0.0
    %1330 = vmatpush2.msra.mxu0 0.0
    %1331 = vmatprep.subr.mxu0 0.0
    %1332 = vmatpush2.msra.mxu0 0.0
    %1333 = vmatprep.subr.mxu0 0.0
    %1334 = vmatpush2.msra.mxu0 0.0
    %1335 = vmatprep.subr.mxu0 0.0
    %1336 = vmatpush2.msra.mxu0 0.0
    %1337 = vmatprep.subr.mxu0 0.0
    %1338 = vmatpush2.msra.mxu0 0.0
    %1339 = vmatprep.subr.mxu0 0.0
    %1340 = vmatpush2.msra.mxu0 0.0
    %1341 = vmatprep.subr.mxu0 0.0
    %1342 = vmatpush2.msra.mxu0 0.0
    %1343 = vmatprep.subr.mxu0 0.0
    %1344 = vmatpush2.msra.mxu0 0.0
    %1345 = vmatprep.subr.mxu0 0.0
    %1346 = vmatpush2.msra.mxu0 0.0
    %1347 = vmatprep.subr.mxu0 0.0
    %1348 = vmatpush2.msra.mxu0 0.0
    %1349 = vmatprep.subr.mxu0 0.0
    %1350 = vmatpush2.msra.mxu0 0.0
    %1351 = vmatprep.subr.mxu0 0.0
    %1352 = vmatpush2.msra.mxu0 0.0
    %1353 = vmatprep.subr.mxu0 0.0
    %1354 = vmatpush2.msra.mxu0 0.0
    %1355 = vmatprep.subr.mxu0 0.0
    %1356 = vmatpush2.msra.mxu0 0.0
    %1357 = vmatprep.subr.mxu0 0.0
    %1358 = vmatpush2.msra.mxu0 0.0
    %1359 = vmatprep.subr.mxu0 0.0
    %1360 = vmatpush2.msra.mxu0 0.0
    %1361 = vmatprep.mubr.f32.mxu0 0.0
    %1362 = vmatmul.mubr.f32.gmra.mxu0 %v1154
    %v1363 = vpop.f32.mrf.mxu0
    %v1364 = vadd.f32 %v1279, %v1363
    %v1365 = vpop.f32.mrf.mxu0
    %1366 = vmatprep.mubr.f32.mxu0 0.0
    %1367 = vmatmul.mubr.f32.gmra.mxu0 %v1155
    %v1368 = vpop.f32.mrf.mxu0
    %v1369 = vadd.f32 %v1284, %v1368
    %v1370 = vpop.f32.mrf.mxu0
    %1371 = vmatprep.mubr.f32.mxu0 0.0
    %1372 = vmatmul.mubr.f32.gmra.mxu0 %v1156
    %v1373 = vpop.f32.mrf.mxu0
    %v1374 = vadd.f32 %v1289, %v1373
    %v1375 = vpop.f32.mrf.mxu0
    %1376 = vmatprep.mubr.f32.mxu0 0.0
    %1377 = vmatmul.mubr.f32.gmra.mxu0 %v1157
    %v1378 = vpop.f32.mrf.mxu0
    %v1379 = vadd.f32 %v1294, %v1378
    %v1380 = vpop.f32.mrf.mxu0
    %1381 = vdwg.mxu0
    %vm1382 = vcmp.ge.f32.partialorder %v1364, 0.0
    %vm1383 = vcmp.ge.f32.partialorder %v1369, 0.0
    %vm1384 = vcmp.ge.f32.partialorder %v1374, 0.0
    %vm1385 = vcmp.ge.f32.partialorder %v1379, 0.0
    %v1386 = vmul.f32 %v1364, %v395
    %v1387 = vmul.f32 %v1369, %v395
    %v1388 = vmul.f32 %v1374, %v395
    %v1389 = vmul.f32 %v1379, %v395
    %v1390 = vsel %vm1382, %v1364, %v1386
    %v1391 = vsel %vm1383, %v1369, %v1387
    %v1392 = vsel %vm1384, %v1374, %v1388
    %v1393 = vsel %vm1385, %v1379, %v1389
    %v1394 = vadd.f32 %v1390, %v1391
    %v1395 = vadd.f32 %v1394, %v1392
    %v1396 = vadd.f32 %v1395, %v1393
    %v1397 = vrot.slane %v1396, 4
    %v1398 = vadd.f32 %v1396, %v1397
    %v1399 = vrot.slane %v1398, 2
    %v1400 = vadd.f32 %v1398, %v1399
    %v1401 = vrot.slane %v1400, 1
    %v1402 = vadd.f32 %v1400, %v1401
    %v1403 = vmul.f32 %v1390, %v1390
    %v1404 = vmul.f32 %v1391, %v1391
    %v1405 = vmul.f32 %v1392, %v1392
    %v1406 = vmul.f32 %v1393, %v1393
    %v1407 = vadd.f32 %v1403, %v1404
    %v1408 = vadd.f32 %v1407, %v1405
    %v1409 = vadd.f32 %v1408, %v1406
    %v1410 = vrot.slane %v1409, 4
    %v1411 = vadd.f32 %v1409, %v1410
    %v1412 = vrot.slane %v1411, 2
    %v1413 = vadd.f32 %v1411, %v1412
    %v1414 = vrot.slane %v1413, 1
    %v1415 = vadd.f32 %v1413, %v1414
    %v1416 = vsel %vm426, %v1402, %v1415
    %1417 = vrot.lane.b32.xlu0 %v1416, 8
    %v1418 = vpop.permute.xlu0 %1417
    %v1419 = vadd.f32 %v1416, %v1418
    %1420 = vrot.lane.b32.xlu0 %v1419, 16
    %v1421 = vpop.permute.xlu0 %1420
    %v1422 = vadd.f32 %v1419, %v1421
    %1423 = vrot.lane.b32.xlu0 %v1422, 32
    %v1424 = vpop.permute.xlu0 %1423
    %v1425 = vadd.f32 %v1422, %v1424
    %1426 = vrot.lane.b32.xlu0 %v1425, 64
    %v1427 = vpop.permute.xlu0 %1426
    %v1428 = vadd.f32 %v1425, %v1427
    %v1429 = vmul.f32 %v1428, 0.001953125
    %v1430 = vmul.f32 %v1429, %v1429
    %v1432 = vrot.slane %v1430, 7
    %v1434 = vsub.f32 %v1429, %v1432
    %v1435 = vld [vmem:[#allocation9 + $0x3] sm:$0x1]
    %v1436 = vadd.f32 %v1434, 1e-05
    %v1437 = vrsqrt.pop %v1436
    %v1439 = vrot.slane %v1437, 1
    %v1441 = vmul.f32 %v1435, %v1439
    %v1442 = vld [vmem:[%s5 + $0x3] sm:$0x1]
    %v1443 = vmul.f32 %v1429, %v1441
    %v1444 = vsub.f32 %v1442, %v1443
    %v1445 = vlaneseq
    %v1446 = vshrl.u32 %v1445, 7
    %v1447 = vsub.s32 0, %v1446
    %v1448 = vrot.slane %v1441, %v1447
    %v1449 = vmul.f32 %v1390, %v1448
    %v1450 = vmul.f32 %v1391, %v1448
    %v1451 = vmul.f32 %v1392, %v1448
    %v1452 = vmul.f32 %v1393, %v1448
    %v1453 = vlaneseq
    %v1454 = vshrl.u32 %v1453, 7
    %v1455 = vsub.s32 0, %v1454
    %v1456 = vrot.slane %v1444, %v1455
    %v1457 = vadd.f32 %v1449, %v1456
    %v1458 = vadd.f32 %v1450, %v1456
    %v1459 = vadd.f32 %v1451, %v1456
    %v1460 = vadd.f32 %v1452, %v1456
    %v1461 = vadd.f32 %v1130, %v1457
    %v1462 = vadd.f32 %v1131, %v1458
    %v1463 = vadd.f32 %v1132, %v1459
    %v1464 = vadd.f32 %v1133, %v1460
    %v1465 = vrot.slane %v1461, 7
    %v1466 = vrot.slane %v1462, 7
    %v1467 = vrot.slane %v1463, 7
    %v1468 = vrot.slane %v1464, 7
    %v1469 = vsel %vm146, %v1467, %v1468
    %v1470 = vsel %vm146, %v1466, %v1467
    %v1471 = vsel %vm146, %v1465, %v1466
    %v1472 = vsel %vm146, %v1468, %v1465
    %v1473 = vsel %vm130, %v1472, 0.0
    %v1474 = vsel %vm131, %v1471, 0.0
    %v1475 = vsel %vm132, %v1470, 0.0
    %v1476 = vsel %vm133, %v1469, 0.0
    %v1477 = vrot.slane %v1461, 1
    %v1478 = vrot.slane %v1462, 1
    %v1479 = vrot.slane %v1463, 1
    %v1480 = vrot.slane %v1464, 1
    %v1481 = vsel %vm159, %v1479, %v1480
    %v1482 = vsel %vm159, %v1478, %v1479
    %v1483 = vsel %vm159, %v1477, %v1478
    %v1484 = vsel %vm159, %v1480, %v1477
    %v1485 = vsel %vm134, %v1483, 0.0
    %v1486 = vsel %vm135, %v1482, 0.0
    %v1487 = vsel %vm136, %v1481, 0.0
    %v1488 = vsel %vm137, %v1484, 0.0
    %s1489 = scalar_lea.vmem [#allocation6], 1536
    %v1490 = vld [vmem:[%s1489] sm:$0xff]
    %v1491 = vld [vmem:[%s1489 + $0x8] sm:$0xff]
    %v1492 = vld [vmem:[%s1489 + $0x10] sm:$0xff]
    %v1493 = vld [vmem:[%s1489 + $0x18] sm:$0xff]
    %v1494 = vld [vmem:[%s1489 + $0x20] sm:$0xff]
    %v1495 = vld [vmem:[%s1489 + $0x28] sm:$0xff]
    %v1496 = vld [vmem:[%s1489 + $0x30] sm:$0xff]
    %v1497 = vld [vmem:[%s1489 + $0x38] sm:$0xff]
    %v1498 = vld [vmem:[%s1489 + $0x40] sm:$0xff]
    %v1499 = vld [vmem:[%s1489 + $0x48] sm:$0xff]
    %v1500 = vld [vmem:[%s1489 + $0x50] sm:$0xff]
    %v1501 = vld [vmem:[%s1489 + $0x58] sm:$0xff]
    %v1502 = vld [vmem:[%s1489 + $0x60] sm:$0xff]
    %v1503 = vld [vmem:[%s1489 + $0x68] sm:$0xff]
    %v1504 = vld [vmem:[%s1489 + $0x70] sm:$0xff]
    %v1505 = vld [vmem:[%s1489 + $0x78] sm:$0xff]
    %v1506 = vld [vmem:[%s1489 + $0x80] sm:$0xff]
    %v1507 = vld [vmem:[%s1489 + $0x88] sm:$0xff]
    %v1508 = vld [vmem:[%s1489 + $0x90] sm:$0xff]
    %v1509 = vld [vmem:[%s1489 + $0x98] sm:$0xff]
    %v1510 = vld [vmem:[%s1489 + $0xa0] sm:$0xff]
    %v1511 = vld [vmem:[%s1489 + $0xa8] sm:$0xff]
    %v1512 = vld [vmem:[%s1489 + $0xb0] sm:$0xff]
    %v1513 = vld [vmem:[%s1489 + $0xb8] sm:$0xff]
    %v1514 = vld [vmem:[%s1489 + $0xc0] sm:$0xff]
    %v1515 = vld [vmem:[%s1489 + $0xc8] sm:$0xff]
    %v1516 = vld [vmem:[%s1489 + $0xd0] sm:$0xff]
    %v1517 = vld [vmem:[%s1489 + $0xd8] sm:$0xff]
    %v1518 = vld [vmem:[%s1489 + $0xe0] sm:$0xff]
    %v1519 = vld [vmem:[%s1489 + $0xe8] sm:$0xff]
    %v1520 = vld [vmem:[%s1489 + $0xf0] sm:$0xff]
    %v1521 = vld [vmem:[%s1489 + $0xf8] sm:$0xff]
    %v1522 = vld [vmem:[%s1489 + $0x100] sm:$0xff]
    %v1523 = vld [vmem:[%s1489 + $0x108] sm:$0xff]
    %v1524 = vld [vmem:[%s1489 + $0x110] sm:$0xff]
    %v1525 = vld [vmem:[%s1489 + $0x118] sm:$0xff]
    %v1526 = vld [vmem:[%s1489 + $0x120] sm:$0xff]
    %v1527 = vld [vmem:[%s1489 + $0x128] sm:$0xff]
    %v1528 = vld [vmem:[%s1489 + $0x130] sm:$0xff]
    %v1529 = vld [vmem:[%s1489 + $0x138] sm:$0xff]
    %v1530 = vld [vmem:[%s1489 + $0x140] sm:$0xff]
    %v1531 = vld [vmem:[%s1489 + $0x148] sm:$0xff]
    %v1532 = vld [vmem:[%s1489 + $0x150] sm:$0xff]
    %v1533 = vld [vmem:[%s1489 + $0x158] sm:$0xff]
    %v1534 = vld [vmem:[%s1489 + $0x160] sm:$0xff]
    %v1535 = vld [vmem:[%s1489 + $0x168] sm:$0xff]
    %v1536 = vld [vmem:[%s1489 + $0x170] sm:$0xff]
    %v1537 = vld [vmem:[%s1489 + $0x178] sm:$0xff]
    %v1538 = vld [vmem:[#allocation8 + $0x4] sm:$0x1]
    %v1539 = vlaneseq
    %v1540 = vshrl.u32 %v1539, 7
    %v1541 = vsub.s32 0, %v1540
    %v1542 = vrot.slane %v1538, %v1541
    %1543 = vmatprep.subr.mxu0 0.0
    %1544 = vmatpush1.msra.mxu0 %v1505
    %1545 = vmatprep.subr.mxu0 0.0
    %1546 = vmatpush1.msra.mxu0 %v1504
    %1547 = vmatprep.subr.mxu0 0.0
    %1548 = vmatpush1.msra.mxu0 %v1503
    %1549 = vmatprep.subr.mxu0 0.0
    %1550 = vmatpush1.msra.mxu0 %v1502
    %1551 = vmatprep.subr.mxu0 0.0
    %1552 = vmatpush1.msra.mxu0 %v1501
    %1553 = vmatprep.subr.mxu0 0.0
    %1554 = vmatpush1.msra.mxu0 %v1500
    %1555 = vmatprep.subr.mxu0 0.0
    %1556 = vmatpush1.msra.mxu0 %v1499
    %1557 = vmatprep.subr.mxu0 0.0
    %1558 = vmatpush1.msra.mxu0 %v1498
    %1559 = vmatprep.subr.mxu0 0.0
    %1560 = vmatpush1.msra.mxu0 %v1497
    %1561 = vmatprep.subr.mxu0 0.0
    %1562 = vmatpush1.msra.mxu0 %v1496
    %1563 = vmatprep.subr.mxu0 0.0
    %1564 = vmatpush1.msra.mxu0 %v1495
    %1565 = vmatprep.subr.mxu0 0.0
    %1566 = vmatpush1.msra.mxu0 %v1494
    %1567 = vmatprep.subr.mxu0 0.0
    %1568 = vmatpush1.msra.mxu0 %v1493
    %1569 = vmatprep.subr.mxu0 0.0
    %1570 = vmatpush1.msra.mxu0 %v1492
    %1571 = vmatprep.subr.mxu0 0.0
    %1572 = vmatpush1.msra.mxu0 %v1491
    %1573 = vmatprep.subr.mxu0 0.0
    %1574 = vmatpush1.msra.mxu0 %v1490
    %1575 = vmatprep.subr.mxu0 0.0
    %1576 = vmatpush2.msra.mxu0 %v1521
    %1577 = vmatprep.subr.mxu0 0.0
    %1578 = vmatpush2.msra.mxu0 %v1520
    %1579 = vmatprep.subr.mxu0 0.0
    %1580 = vmatpush2.msra.mxu0 %v1519
    %1581 = vmatprep.subr.mxu0 0.0
    %1582 = vmatpush2.msra.mxu0 %v1518
    %1583 = vmatprep.subr.mxu0 0.0
    %1584 = vmatpush2.msra.mxu0 %v1517
    %1585 = vmatprep.subr.mxu0 0.0
    %1586 = vmatpush2.msra.mxu0 %v1516
    %1587 = vmatprep.subr.mxu0 0.0
    %1588 = vmatpush2.msra.mxu0 %v1515
    %1589 = vmatprep.subr.mxu0 0.0
    %1590 = vmatpush2.msra.mxu0 %v1514
    %1591 = vmatprep.subr.mxu0 0.0
    %1592 = vmatpush2.msra.mxu0 %v1513
    %1593 = vmatprep.subr.mxu0 0.0
    %1594 = vmatpush2.msra.mxu0 %v1512
    %1595 = vmatprep.subr.mxu0 0.0
    %1596 = vmatpush2.msra.mxu0 %v1511
    %1597 = vmatprep.subr.mxu0 0.0
    %1598 = vmatpush2.msra.mxu0 %v1510
    %1599 = vmatprep.subr.mxu0 0.0
    %1600 = vmatpush2.msra.mxu0 %v1509
    %1601 = vmatprep.subr.mxu0 0.0
    %1602 = vmatpush2.msra.mxu0 %v1508
    %1603 = vmatprep.subr.mxu0 0.0
    %1604 = vmatpush2.msra.mxu0 %v1507
    %1605 = vmatprep.subr.mxu0 0.0
    %1606 = vmatpush2.msra.mxu0 %v1506
    %1607 = vmatprep.mubr.f32.mxu0 %v1461
    %1608 = vmatmul.mubr.f32.gmra.mxu0 %v1473
    %v1609 = vpop.f32.mrf.mxu0
    %v1610 = vadd.f32 %v1542, %v1609
    %v1611 = vpop.f32.mrf.mxu0
    %1612 = vmatprep.mubr.f32.mxu0 %v1462
    %1613 = vmatmul.mubr.f32.gmra.mxu0 %v1474
    %v1614 = vpop.f32.mrf.mxu0
    %v1615 = vadd.f32 %v1542, %v1614
    %v1616 = vpop.f32.mrf.mxu0
    %1617 = vmatprep.mubr.f32.mxu0 %v1463
    %1618 = vmatmul.mubr.f32.gmra.mxu0 %v1475
    %v1619 = vpop.f32.mrf.mxu0
    %v1620 = vadd.f32 %v1542, %v1619
    %v1621 = vpop.f32.mrf.mxu0
    %1622 = vmatprep.mubr.f32.mxu0 %v1464
    %1623 = vmatmul.mubr.f32.gmra.mxu0 %v1476
    %v1624 = vpop.f32.mrf.mxu0
    %v1625 = vadd.f32 %v1542, %v1624
    %v1626 = vpop.f32.mrf.mxu0
    %1627 = vdwg.mxu0
    %1628 = vmatprep.subr.mxu0 0.0
    %1629 = vmatpush1.msra.mxu0 %v1537
    %1630 = vmatprep.subr.mxu0 0.0
    %1631 = vmatpush1.msra.mxu0 %v1536
    %1632 = vmatprep.subr.mxu0 0.0
    %1633 = vmatpush1.msra.mxu0 %v1535
    %1634 = vmatprep.subr.mxu0 0.0
    %1635 = vmatpush1.msra.mxu0 %v1534
    %1636 = vmatprep.subr.mxu0 0.0
    %1637 = vmatpush1.msra.mxu0 %v1533
    %1638 = vmatprep.subr.mxu0 0.0
    %1639 = vmatpush1.msra.mxu0 %v1532
    %1640 = vmatprep.subr.mxu0 0.0
    %1641 = vmatpush1.msra.mxu0 %v1531
    %1642 = vmatprep.subr.mxu0 0.0
    %1643 = vmatpush1.msra.mxu0 %v1530
    %1644 = vmatprep.subr.mxu0 0.0
    %1645 = vmatpush1.msra.mxu0 %v1529
    %1646 = vmatprep.subr.mxu0 0.0
    %1647 = vmatpush1.msra.mxu0 %v1528
    %1648 = vmatprep.subr.mxu0 0.0
    %1649 = vmatpush1.msra.mxu0 %v1527
    %1650 = vmatprep.subr.mxu0 0.0
    %1651 = vmatpush1.msra.mxu0 %v1526
    %1652 = vmatprep.subr.mxu0 0.0
    %1653 = vmatpush1.msra.mxu0 %v1525
    %1654 = vmatprep.subr.mxu0 0.0
    %1655 = vmatpush1.msra.mxu0 %v1524
    %1656 = vmatprep.subr.mxu0 0.0
    %1657 = vmatpush1.msra.mxu0 %v1523
    %1658 = vmatprep.subr.mxu0 0.0
    %1659 = vmatpush1.msra.mxu0 %v1522
    %1660 = vmatprep.subr.mxu0 0.0
    %1661 = vmatpush2.msra.mxu0 0.0
    %1662 = vmatprep.subr.mxu0 0.0
    %1663 = vmatpush2.msra.mxu0 0.0
    %1664 = vmatprep.subr.mxu0 0.0
    %1665 = vmatpush2.msra.mxu0 0.0
    %1666 = vmatprep.subr.mxu0 0.0
    %1667 = vmatpush2.msra.mxu0 0.0
    %1668 = vmatprep.subr.mxu0 0.0
    %1669 = vmatpush2.msra.mxu0 0.0
    %1670 = vmatprep.subr.mxu0 0.0
    %1671 = vmatpush2.msra.mxu0 0.0
    %1672 = vmatprep.subr.mxu0 0.0
    %1673 = vmatpush2.msra.mxu0 0.0
    %1674 = vmatprep.subr.mxu0 0.0
    %1675 = vmatpush2.msra.mxu0 0.0
    %1676 = vmatprep.subr.mxu0 0.0
    %1677 = vmatpush2.msra.mxu0 0.0
    %1678 = vmatprep.subr.mxu0 0.0
    %1679 = vmatpush2.msra.mxu0 0.0
    %1680 = vmatprep.subr.mxu0 0.0
    %1681 = vmatpush2.msra.mxu0 0.0
    %1682 = vmatprep.subr.mxu0 0.0
    %1683 = vmatpush2.msra.mxu0 0.0
    %1684 = vmatprep.subr.mxu0 0.0
    %1685 = vmatpush2.msra.mxu0 0.0
    %1686 = vmatprep.subr.mxu0 0.0
    %1687 = vmatpush2.msra.mxu0 0.0
    %1688 = vmatprep.subr.mxu0 0.0
    %1689 = vmatpush2.msra.mxu0 0.0
    %1690 = vmatprep.subr.mxu0 0.0
    %1691 = vmatpush2.msra.mxu0 0.0
    %1692 = vmatprep.mubr.f32.mxu0 0.0
    %1693 = vmatmul.mubr.f32.gmra.mxu0 %v1485
    %v1694 = vpop.f32.mrf.mxu0
    %v1695 = vadd.f32 %v1610, %v1694
    %v1696 = vpop.f32.mrf.mxu0
    %1697 = vmatprep.mubr.f32.mxu0 0.0
    %1698 = vmatmul.mubr.f32.gmra.mxu0 %v1486
    %v1699 = vpop.f32.mrf.mxu0
    %v1700 = vadd.f32 %v1615, %v1699
    %v1701 = vpop.f32.mrf.mxu0
    %1702 = vmatprep.mubr.f32.mxu0 0.0
    %1703 = vmatmul.mubr.f32.gmra.mxu0 %v1487
    %v1704 = vpop.f32.mrf.mxu0
    %v1705 = vadd.f32 %v1620, %v1704
    %v1706 = vpop.f32.mrf.mxu0
    %1707 = vmatprep.mubr.f32.mxu0 0.0
    %1708 = vmatmul.mubr.f32.gmra.mxu0 %v1488
    %v1709 = vpop.f32.mrf.mxu0
    %v1710 = vadd.f32 %v1625, %v1709
    %v1711 = vpop.f32.mrf.mxu0
    %1712 = vdwg.mxu0
    %vm1713 = vcmp.ge.f32.partialorder %v1695, 0.0
    %vm1714 = vcmp.ge.f32.partialorder %v1700, 0.0
    %vm1715 = vcmp.ge.f32.partialorder %v1705, 0.0
    %vm1716 = vcmp.ge.f32.partialorder %v1710, 0.0
    %v1717 = vmul.f32 %v1695, %v395
    %v1718 = vmul.f32 %v1700, %v395
    %v1719 = vmul.f32 %v1705, %v395
    %v1720 = vmul.f32 %v1710, %v395
    %v1721 = vsel %vm1713, %v1695, %v1717
    %v1722 = vsel %vm1714, %v1700, %v1718
    %v1723 = vsel %vm1715, %v1705, %v1719
    %v1724 = vsel %vm1716, %v1710, %v1720
    %v1725 = vadd.f32 %v1721, %v1722
    %v1726 = vadd.f32 %v1725, %v1723
    %v1727 = vadd.f32 %v1726, %v1724
    %v1728 = vrot.slane %v1727, 4
    %v1729 = vadd.f32 %v1727, %v1728
    %v1730 = vrot.slane %v1729, 2
    %v1731 = vadd.f32 %v1729, %v1730
    %v1732 = vrot.slane %v1731, 1
    %v1733 = vadd.f32 %v1731, %v1732
    %v1734 = vmul.f32 %v1721, %v1721
    %v1735 = vmul.f32 %v1722, %v1722
    %v1736 = vmul.f32 %v1723, %v1723
    %v1737 = vmul.f32 %v1724, %v1724
    %v1738 = vadd.f32 %v1734, %v1735
    %v1739 = vadd.f32 %v1738, %v1736
    %v1740 = vadd.f32 %v1739, %v1737
    %v1741 = vrot.slane %v1740, 4
    %v1742 = vadd.f32 %v1740, %v1741
    %v1743 = vrot.slane %v1742, 2
    %v1744 = vadd.f32 %v1742, %v1743
    %v1745 = vrot.slane %v1744, 1
    %v1746 = vadd.f32 %v1744, %v1745
    %v1747 = vsel %vm426, %v1733, %v1746
    %1748 = vrot.lane.b32.xlu0 %v1747, 8
    %v1749 = vpop.permute.xlu0 %1748
    %v1750 = vadd.f32 %v1747, %v1749
    %1751 = vrot.lane.b32.xlu0 %v1750, 16
    %v1752 = vpop.permute.xlu0 %1751
    %v1753 = vadd.f32 %v1750, %v1752
    %1754 = vrot.lane.b32.xlu0 %v1753, 32
    %v1755 = vpop.permute.xlu0 %1754
    %v1756 = vadd.f32 %v1753, %v1755
    %1757 = vrot.lane.b32.xlu0 %v1756, 64
    %v1758 = vpop.permute.xlu0 %1757
    %v1759 = vadd.f32 %v1756, %v1758
    %v1760 = vmul.f32 %v1759, 0.001953125
    %v1761 = vmul.f32 %v1760, %v1760
    %v1763 = vrot.slane %v1761, 7
    %v1765 = vsub.f32 %v1760, %v1763
    %v1766 = vld [vmem:[#allocation9 + $0x4] sm:$0x1]
    %v1767 = vadd.f32 %v1765, 1e-05
    %v1768 = vrsqrt.pop %v1767
    %v1770 = vrot.slane %v1768, 1
    %v1772 = vmul.f32 %v1766, %v1770
    %v1773 = vld [vmem:[%s5 + $0x4] sm:$0x1]
    %v1774 = vmul.f32 %v1760, %v1772
    %v1775 = vsub.f32 %v1773, %v1774
    %v1776 = vlaneseq
    %v1777 = vshrl.u32 %v1776, 7
    %v1778 = vsub.s32 0, %v1777
    %v1779 = vrot.slane %v1772, %v1778
    %v1780 = vmul.f32 %v1721, %v1779
    %v1781 = vmul.f32 %v1722, %v1779
    %v1782 = vmul.f32 %v1723, %v1779
    %v1783 = vmul.f32 %v1724, %v1779
    %v1784 = vlaneseq
    %v1785 = vshrl.u32 %v1784, 7
    %v1786 = vsub.s32 0, %v1785
    %v1787 = vrot.slane %v1775, %v1786
    %v1788 = vadd.f32 %v1780, %v1787
    %v1789 = vadd.f32 %v1781, %v1787
    %v1790 = vadd.f32 %v1782, %v1787
    %v1791 = vadd.f32 %v1783, %v1787
    %v1792 = vadd.f32 %v1461, %v1788
    %v1793 = vadd.f32 %v1462, %v1789
    %v1794 = vadd.f32 %v1463, %v1790
    %v1795 = vadd.f32 %v1464, %v1791
    %1796 = vst [vmem:[#allocation11] sm:$0xff] %v1792
    %1797 = vst [vmem:[#allocation11 + $0x8] sm:$0xff] %v1793
    %1798 = vst [vmem:[#allocation11 + $0x10] sm:$0xff] %v1794
    %1799 = vst [vmem:[#allocation11 + $0x18] sm:$0xff] %v1795
    // Predicated region
    $region42: #{resblock_pallas_packed.1} parent=1 // pred_check
      _
    $region43: #{resblock_pallas_packed.1} parent=1 // pred_check_branch
      %1801 = sbr.rel (0) target = $region45
    $region44: #{resblock_pallas_packed.1} parent=1 // pred_region
      %s1803 = ssub.s32 512, 512
      %1804 = vsyncadd [#allocation5], %s1803
      %s1805 = sshll.u32 [#allocation11], 4
      %s1806 = int_to_ptr.vmem [resolvable:$true] %s1805
      %1811 = dma.vmem_to_hbm [thread:$0]  %s1806, 512, %s6, [#allocation5], 128, 128, 8
    $region45: #{resblock_pallas_packed.1} parent=1 // pred_fallthru
      _
    // Predicated region
    $region46: #{resblock_pallas_packed.1} parent=1 // pred_check
      _
    $region47: #{resblock_pallas_packed.1} parent=1 // pred_check_branch
      %1813 = sbr.rel (0) target = $region49
    $region48: #{resblock_pallas_packed.1} parent=1 // pred_region
      %1814 = dma.done [#allocation5], 512
    $region49: #{resblock_pallas_packed.1} parent=1 // pred_fallthru
      _
    %1815 = vsyncpa [#allocation4], 1
    %1816 = vsyncpa [#allocation7], 1
    %1817 = vsyncpa [#allocation10], 1
    %1818 = vsyncpa [#allocation5], 1

</llo_original>
